<compile_context>
chip_gen: v7x
topology: tpu7x:2x2x1
jax: 0.10.0
libtpu: 0.0.40
codegen_flags: <defaults>
</compile_context>

<pallas_src>
import functools

import jax
import jax.numpy as jnp
from jax.experimental import pallas as pl
from jax.experimental.pallas import tpu as pltpu

KERNEL_SIZE = 2  # TCNModel default


def _causal_shift(x, d, L):
    """x: (B*L, C) flattened (batch-major, time within batch).
    Returns y with y[b*L + t] = x[b*L + t - d] for t >= d, else 0.
    The roll wraps across batch boundaries only for rows t < d, which the mask zeroes."""
    rolled = pltpu.roll(x, shift=d, axis=0)                      # XLU sublane rotation
    t = jax.lax.broadcasted_iota(jnp.int32, x.shape, 0) % L      # time index per row
    return jnp.where(t >= d, rolled, 0.0)


def _tcn_fused_kernel(level_cfgs, L, x_ref, *refs):
    """Entire TCN forward: all TemporalBlocks + last-timestep select + Linear decoder."""
    refs = list(refs)
    out_ref = refs.pop()
    b_dec_ref = refs.pop()
    w_dec_ref = refs.pop()

    x = x_ref[...].astype(jnp.float32)          # (M, C0), M = B*L
    M = x.shape[0]

    ri = 0
    for (c_in, c_out, d, has_ds) in level_cfgs:
        w1_ref, b1_ref, w2_ref, b2_ref = refs[ri:ri + 4]
        ri += 4
        if has_ds:
            wds_ref, bds_ref = refs[ri:ri + 2]
            ri += 2

        # conv1 (dilated, causal): both taps fused into one K = 2*C_in matmul.
        x_prev = _causal_shift(x, d, L)
        h1 = jnp.dot(jnp.concatenate([x_prev, x], axis=1), w1_ref[...],
                     preferred_element_type=jnp.float32) + b1_ref[...]
        h1 = jnp.maximum(h1, 0.0)
        # dropout: identity in eval mode

        # conv2 (dilated, causal)
        h1_prev = _causal_shift(h1, d, L)
        h2 = jnp.dot(jnp.concatenate([h1_prev, h1], axis=1), w2_ref[...],
                     preferred_element_type=jnp.float32) + b2_ref[...]
        h2 = jnp.maximum(h2, 0.0)

        # residual path (1x1 conv downsample when channel counts differ)
        if has_ds:
            res = jnp.dot(x, wds_ref[...],
                          preferred_element_type=jnp.float32) + bds_ref[...]
        else:
            res = x
        x = jnp.maximum(h2 + res, 0.0)

    # Decoder epilogue: pick t = L-1 of each sequence via one-hot matmul, then Linear(C,1).
    B = out_ref.shape[0]
    b_idx = jax.lax.broadcasted_iota(jnp.int32, (B, M), 0)
    r_idx = jax.lax.broadcasted_iota(jnp.int32, (B, M), 1)
    sel = (r_idx == b_idx * L + (L - 1)).astype(jnp.float32)       # (B, M) one-hot rows
    h_last = jnp.dot(sel, x, preferred_element_type=jnp.float32)   # (B, C_last)
    # TODO(synk): nn.Dropout before the decoder is stochastic only in training; eval = identity.
    y = jnp.dot(h_last, w_dec_ref[...],
                preferred_element_type=jnp.float32) + b_dec_ref[...]
    out_ref[...] = y.astype(out_ref.dtype)


def tcn_model_forward(x_ncl, block_params, w_dec, b_dec):
    """x_ncl: (B, 128, L) -- same NCL layout as the PyTorch module input. Returns (B, 1)."""
    B, C0, L = x_ncl.shape
    # channels-last, batch folded into the matmul M dimension: (B*L, C0)
    x = jnp.transpose(x_ncl, (0, 2, 1)).reshape(B * L, C0).astype(jnp.float32)

    inputs = [x]
    level_cfgs = []
    c_in = C0
    for i, p in enumerate(block_params):
        c_out = p["w1"].shape[1]
        has_ds = p["wds"] is not None
        d = 2 ** i
        assert d < L, "dilation must be smaller than sequence length for this setup"
        level_cfgs.append((c_in, c_out, d, has_ds))
        inputs += [p["w1"], p["b1"], p["w2"], p["b2"]]
        if has_ds:
            inputs += [p["wds"], p["bds"]]
        c_in = c_out
    inputs += [w_dec, b_dec]

    # Full-array blocks (exempt from the (8,128) divisibility rule); everything fits VMEM.
    in_specs = [pl.BlockSpec(a.shape, lambda i, n=a.ndim: (0,) * n) for a in inputs]

    kernel = functools.partial(_tcn_fused_kernel, tuple(level_cfgs), L)
    # TODO(synk): for large B on v7x, tile the grid over batch with
    # dimension_semantics=("parallel",) so both TensorCores split the work.
    return pl.pallas_call(
        kernel,
        out_shape=jax.ShapeDtypeStruct((B, 1), jnp.float32),
        grid=(1,),
        in_specs=in_specs,
        out_specs=pl.BlockSpec((B, 1), lambda i: (0, 0)),
        compiler_params=pltpu.CompilerParams(dimension_semantics=("arbitrary",)),
    )(*inputs)


def init_params(key, num_inputs, num_channels, kernel_size=KERNEL_SIZE):
    """Deterministic synthetic parameters. PyTorch Conv1d weight is (C_out, C_in, K);
    each conv here is stored tap-stacked as W = [W_tap0^T ; W_tap1^T] of shape
    (2*C_in, C_out) so the kernel computes [x(t-d) | x(t)] @ W in one MXU pass.
    weight_norm is folded into these effective weights."""
    assert kernel_size == 2
    blocks = []
    c_in = num_inputs
    for c_out in num_channels:
        key, k1, k2, k3, k4 = jax.random.split(key, 5)
        w1 = jax.random.normal(k1, (2 * c_in, c_out), jnp.float32) * 0.05
        b1 = jax.random.normal(k2, (1, c_out), jnp.float32) * 0.05
        w2 = jax.random.normal(k3, (2 * c_out, c_out), jnp.float32) * 0.05
        b2 = jax.random.normal(k4, (1, c_out), jnp.float32) * 0.05
        if c_in != c_out:
            key, k5, k6 = jax.random.split(key, 3)
            wds = jax.random.normal(k5, (c_in, c_out), jnp.float32) * 0.05
            bds = jax.random.normal(k6, (1, c_out), jnp.float32) * 0.05
        else:
            wds = bds = None
        blocks.append(dict(w1=w1, b1=b1, w2=w2, b2=b2, wds=wds, bds=bds))
        c_in = c_out
    key, kd1, kd2 = jax.random.split(key, 3)
    w_dec = jax.random.normal(kd1, (c_in, 1), jnp.float32) * 0.05
    b_dec = jax.random.normal(kd2, (1, 1), jnp.float32) * 0.05
    return blocks, w_dec, b_dec


def _reference_forward(x_ncl, block_params, w_dec, b_dec):
    """Plain-JAX reference using the standard pad+chomp causal-conv formulation."""
    x = jnp.transpose(x_ncl, (0, 2, 1)).astype(jnp.float32)   # (B, L, C)
    for i, p in enumerate(block_params):
        d = 2 ** i
        c_in = x.shape[-1]
        w1a, w1b = p["w1"][:c_in], p["w1"][c_in:]
        xpad = jnp.pad(x, ((0, 0), (d, 0), (0, 0)))
        h1 = jax.nn.relu(jnp.einsum("blc,cf->blf", xpad[:, :-d], w1a)
                         + jnp.einsum("blc,cf->blf", x, w1b) + p["b1"])
        c_out = h1.shape[-1]
        w2a, w2b = p["w2"][:c_out], p["w2"][c_out:]
        h1pad = jnp.pad(h1, ((0, 0), (d, 0), (0, 0)))
        h2 = jax.nn.relu(jnp.einsum("blc,cf->blf", h1pad[:, :-d], w2a)
                         + jnp.einsum("blc,cf->blf", h1, w2b) + p["b2"])
        if p["wds"] is None:
            res = x
        else:
            res = jnp.einsum("blc,cf->blf", x, p["wds"]) + p["bds"]
        x = jax.nn.relu(h2 + res)
    return x[:, -1, :] @ w_dec + b_dec


if __name__ == "__main__":
    B, L = 2, 16
    NUM_INPUTS = 128                  # fixed by TCNModel.__init__ (TemporalConvNetwork(128, ...))
    NUM_CHANNELS = [32, 32, 16]       # small synthetic channel stack (exercises both residual paths)

    key = jax.random.PRNGKey(0)
    key, kx, kp = jax.random.split(key, 3)
    x = jax.random.normal(kx, (B, NUM_INPUTS, L), jnp.float32)

    block_params, w_dec, b_dec = init_params(kp, NUM_INPUTS, NUM_CHANNELS)

    y = tcn_model_forward(x, block_params, w_dec, b_dec)
    jax.block_until_ready(y)

    assert y.shape == (B, 1) and y.dtype == jnp.float32
    y_ref = _reference_forward(x, block_params, w_dec, b_dec)
    assert jnp.allclose(y, y_ref, atol=1e-4, rtol=1e-4)
    print("KERNEL_OK")
</pallas_src>

<mosaic_0001>
module attributes {stable_mosaic.version = 11 : i64} {
  func.func @_tcn_fused_kernel(%arg0: i32, %arg1: memref<32x128xf32, #tpu.memory_space<vmem>>, %arg2: memref<256x32xf32, #tpu.memory_space<vmem>>, %arg3: memref<1x32xf32, #tpu.memory_space<vmem>>, %arg4: memref<64x32xf32, #tpu.memory_space<vmem>>, %arg5: memref<1x32xf32, #tpu.memory_space<vmem>>, %arg6: memref<128x32xf32, #tpu.memory_space<vmem>>, %arg7: memref<1x32xf32, #tpu.memory_space<vmem>>, %arg8: memref<64x32xf32, #tpu.memory_space<vmem>>, %arg9: memref<1x32xf32, #tpu.memory_space<vmem>>, %arg10: memref<64x32xf32, #tpu.memory_space<vmem>>, %arg11: memref<1x32xf32, #tpu.memory_space<vmem>>, %arg12: memref<64x16xf32, #tpu.memory_space<vmem>>, %arg13: memref<1x16xf32, #tpu.memory_space<vmem>>, %arg14: memref<32x16xf32, #tpu.memory_space<vmem>>, %arg15: memref<1x16xf32, #tpu.memory_space<vmem>>, %arg16: memref<32x16xf32, #tpu.memory_space<vmem>>, %arg17: memref<1x16xf32, #tpu.memory_space<vmem>>, %arg18: memref<16x1xf32, #tpu.memory_space<vmem>>, %arg19: memref<1x1xf32, #tpu.memory_space<vmem>>, %arg20: memref<2x1xf32, #tpu.memory_space<vmem>>) attributes {dimension_semantics = [#tpu.dimension_semantics<arbitrary>], iteration_bounds = array<i64: 1>, scalar_prefetch = 0 : i64, scratch_operands = 0 : i64, tpu.core_type = #tpu.core_type<tc>, window_params = [{pipeline_mode = #tpu.pipeline_mode<synchronous>, transform_indices = @transform_0, window_bounds = array<i64: 32, 128>}, {pipeline_mode = #tpu.pipeline_mode<synchronous>, transform_indices = @transform_1, window_bounds = array<i64: 256, 32>}, {pipeline_mode = #tpu.pipeline_mode<synchronous>, transform_indices = @transform_2, window_bounds = array<i64: 1, 32>}, {pipeline_mode = #tpu.pipeline_mode<synchronous>, transform_indices = @transform_3, window_bounds = array<i64: 64, 32>}, {pipeline_mode = #tpu.pipeline_mode<synchronous>, transform_indices = @transform_4, window_bounds = array<i64: 1, 32>}, {pipeline_mode = #tpu.pipeline_mode<synchronous>, transform_indices = @transform_5, window_bounds = array<i64: 128, 32>}, {pipeline_mode = #tpu.pipeline_mode<synchronous>, transform_indices = @transform_6, window_bounds = array<i64: 1, 32>}, {pipeline_mode = #tpu.pipeline_mode<synchronous>, transform_indices = @transform_7, window_bounds = array<i64: 64, 32>}, {pipeline_mode = #tpu.pipeline_mode<synchronous>, transform_indices = @transform_8, window_bounds = array<i64: 1, 32>}, {pipeline_mode = #tpu.pipeline_mode<synchronous>, transform_indices = @transform_9, window_bounds = array<i64: 64, 32>}, {pipeline_mode = #tpu.pipeline_mode<synchronous>, transform_indices = @transform_10, window_bounds = array<i64: 1, 32>}, {pipeline_mode = #tpu.pipeline_mode<synchronous>, transform_indices = @transform_11, window_bounds = array<i64: 64, 16>}, {pipeline_mode = #tpu.pipeline_mode<synchronous>, transform_indices = @transform_12, window_bounds = array<i64: 1, 16>}, {pipeline_mode = #tpu.pipeline_mode<synchronous>, transform_indices = @transform_13, window_bounds = array<i64: 32, 16>}, {pipeline_mode = #tpu.pipeline_mode<synchronous>, transform_indices = @transform_14, window_bounds = array<i64: 1, 16>}, {pipeline_mode = #tpu.pipeline_mode<synchronous>, transform_indices = @transform_15, window_bounds = array<i64: 32, 16>}, {pipeline_mode = #tpu.pipeline_mode<synchronous>, transform_indices = @transform_16, window_bounds = array<i64: 1, 16>}, {pipeline_mode = #tpu.pipeline_mode<synchronous>, transform_indices = @transform_17, window_bounds = array<i64: 16, 1>}, {pipeline_mode = #tpu.pipeline_mode<synchronous>, transform_indices = @transform_18, window_bounds = array<i64: 1, 1>}, {pipeline_mode = #tpu.pipeline_mode<synchronous>, transform_indices = @transform_19, window_bounds = array<i64: 2, 1>}]} {
    %c0 = arith.constant 0 : index
    %c0_0 = arith.constant 0 : index
    %0 = vector.load %arg1[%c0, %c0_0] : memref<32x128xf32, #tpu.memory_space<vmem>>, vector<32x128xf32>
    %c1_i32 = arith.constant 1 : i32
    %1 = tpu.dynamic_rotate %0 by %c1_i32 dim 0 : vector<32x128xf32>, i32 -> vector<32x128xf32>
    %2 = tpu.iota {dimensions = array<i32: 0>} : vector<32x128xi32>
    %c16_i32 = arith.constant 16 : i32
    %c0_i32 = arith.constant 0 : i32
    %3 = arith.cmpi eq, %c16_i32, %c0_i32 : i32
    %c1_i32_1 = arith.constant 1 : i32
    %4 = arith.select %3, %c1_i32_1, %c16_i32 : i32
    %5 = vector.broadcast %4 : i32 to vector<32x128xi32>
    %6 = arith.remsi %2, %5 : vector<32x128xi32>
    %c0_i32_2 = arith.constant 0 : i32
    %7 = vector.broadcast %c0_i32_2 : i32 to vector<32x128xi32>
    %8 = arith.cmpi ne, %6, %7 : vector<32x128xi32>
    %c0_i32_3 = arith.constant 0 : i32
    %9 = vector.broadcast %c0_i32_3 : i32 to vector<32x128xi32>
    %10 = arith.cmpi slt, %6, %9 : vector<32x128xi32>
    %c0_i32_4 = arith.constant 0 : i32
    %11 = arith.cmpi slt, %4, %c0_i32_4 : i32
    %12 = vector.broadcast %11 : i1 to vector<32x128xi1>
    %13 = vector.broadcast %12 : vector<32x128xi1> to vector<32x128xi1>
    %14 = arith.xori %10, %13 : vector<32x128xi1>
    %15 = arith.andi %14, %8 : vector<32x128xi1>
    %16 = vector.broadcast %4 : i32 to vector<32x128xi32>
    %17 = arith.addi %6, %16 : vector<32x128xi32>
    %18 = arith.select %15, %17, %6 : vector<32x128xi1>, vector<32x128xi32>
    %c1_i32_5 = arith.constant 1 : i32
    %19 = vector.broadcast %c1_i32_5 : i32 to vector<32x128xi32>
    %20 = arith.cmpi sge, %18, %19 : vector<32x128xi32>
    %cst = arith.constant 0.000000e+00 : f32
    %21 = vector.broadcast %cst : f32 to vector<32x128xf32>
    %22 = arith.select %20, %1, %21 : vector<32x128xi1>, vector<32x128xf32>
    %23 = tpu.concatenate %22, %0 in 1 : vector<32x128xf32>, vector<32x128xf32> -> vector<32x256xf32>
    %c0_6 = arith.constant 0 : index
    %c0_7 = arith.constant 0 : index
    %24 = vector.load %arg2[%c0_6, %c0_7] : memref<256x32xf32, #tpu.memory_space<vmem>>, vector<256x32xf32>
    %cst_8 = arith.constant dense<0.000000e+00> : vector<32x32xf32>
    %25 = tpu.matmul %23, %24, %cst_8 {dimension_numbers = #tpu.dot_dimension_numbers<[1], [0], [0], [1], [0, 0, 1, 1], [], []>} : vector<32x256xf32>, vector<256x32xf32>, vector<32x32xf32> -> vector<32x32xf32>
    %c0_9 = arith.constant 0 : index
    %c0_10 = arith.constant 0 : index
    %26 = vector.load %arg3[%c0_9, %c0_10] : memref<1x32xf32, #tpu.memory_space<vmem>>, vector<1x32xf32>
    %27 = vector.broadcast %26 : vector<1x32xf32> to vector<32x32xf32>
    %28 = arith.addf %25, %27 : vector<32x32xf32>
    %cst_11 = arith.constant 0.000000e+00 : f32
    %29 = vector.broadcast %cst_11 : f32 to vector<32x32xf32>
    %30 = arith.maximumf %28, %29 : vector<32x32xf32>
    %c1_i32_12 = arith.constant 1 : i32
    %31 = tpu.dynamic_rotate %30 by %c1_i32_12 dim 0 : vector<32x32xf32>, i32 -> vector<32x32xf32>
    %32 = tpu.iota {dimensions = array<i32: 0>} : vector<32x32xi32>
    %c16_i32_13 = arith.constant 16 : i32
    %c0_i32_14 = arith.constant 0 : i32
    %33 = arith.cmpi eq, %c16_i32_13, %c0_i32_14 : i32
    %c1_i32_15 = arith.constant 1 : i32
    %34 = arith.select %33, %c1_i32_15, %c16_i32_13 : i32
    %35 = vector.broadcast %34 : i32 to vector<32x32xi32>
    %36 = arith.remsi %32, %35 : vector<32x32xi32>
    %c0_i32_16 = arith.constant 0 : i32
    %37 = vector.broadcast %c0_i32_16 : i32 to vector<32x32xi32>
    %38 = arith.cmpi ne, %36, %37 : vector<32x32xi32>
    %c0_i32_17 = arith.constant 0 : i32
    %39 = vector.broadcast %c0_i32_17 : i32 to vector<32x32xi32>
    %40 = arith.cmpi slt, %36, %39 : vector<32x32xi32>
    %c0_i32_18 = arith.constant 0 : i32
    %41 = arith.cmpi slt, %34, %c0_i32_18 : i32
    %42 = vector.broadcast %41 : i1 to vector<32x32xi1>
    %43 = vector.broadcast %42 : vector<32x32xi1> to vector<32x32xi1>
    %44 = arith.xori %40, %43 : vector<32x32xi1>
    %45 = arith.andi %44, %38 : vector<32x32xi1>
    %46 = vector.broadcast %34 : i32 to vector<32x32xi32>
    %47 = arith.addi %36, %46 : vector<32x32xi32>
    %48 = arith.select %45, %47, %36 : vector<32x32xi1>, vector<32x32xi32>
    %c1_i32_19 = arith.constant 1 : i32
    %49 = vector.broadcast %c1_i32_19 : i32 to vector<32x32xi32>
    %50 = arith.cmpi sge, %48, %49 : vector<32x32xi32>
    %cst_20 = arith.constant 0.000000e+00 : f32
    %51 = vector.broadcast %cst_20 : f32 to vector<32x32xf32>
    %52 = arith.select %50, %31, %51 : vector<32x32xi1>, vector<32x32xf32>
    %53 = tpu.concatenate %52, %30 in 1 : vector<32x32xf32>, vector<32x32xf32> -> vector<32x64xf32>
    %c0_21 = arith.constant 0 : index
    %c0_22 = arith.constant 0 : index
    %54 = vector.load %arg4[%c0_21, %c0_22] : memref<64x32xf32, #tpu.memory_space<vmem>>, vector<64x32xf32>
    %cst_23 = arith.constant dense<0.000000e+00> : vector<32x32xf32>
    %55 = tpu.matmul %53, %54, %cst_23 {dimension_numbers = #tpu.dot_dimension_numbers<[1], [0], [0], [1], [0, 0, 1, 1], [], []>} : vector<32x64xf32>, vector<64x32xf32>, vector<32x32xf32> -> vector<32x32xf32>
    %c0_24 = arith.constant 0 : index
    %c0_25 = arith.constant 0 : index
    %56 = vector.load %arg5[%c0_24, %c0_25] : memref<1x32xf32, #tpu.memory_space<vmem>>, vector<1x32xf32>
    %57 = vector.broadcast %56 : vector<1x32xf32> to vector<32x32xf32>
    %58 = arith.addf %55, %57 : vector<32x32xf32>
    %cst_26 = arith.constant 0.000000e+00 : f32
    %59 = vector.broadcast %cst_26 : f32 to vector<32x32xf32>
    %60 = arith.maximumf %58, %59 : vector<32x32xf32>
    %c0_27 = arith.constant 0 : index
    %c0_28 = arith.constant 0 : index
    %61 = vector.load %arg6[%c0_27, %c0_28] : memref<128x32xf32, #tpu.memory_space<vmem>>, vector<128x32xf32>
    %cst_29 = arith.constant dense<0.000000e+00> : vector<32x32xf32>
    %62 = tpu.matmul %0, %61, %cst_29 {dimension_numbers = #tpu.dot_dimension_numbers<[1], [0], [0], [1], [0, 0, 1, 1], [], []>} : vector<32x128xf32>, vector<128x32xf32>, vector<32x32xf32> -> vector<32x32xf32>
    %c0_30 = arith.constant 0 : index
    %c0_31 = arith.constant 0 : index
    %63 = vector.load %arg7[%c0_30, %c0_31] : memref<1x32xf32, #tpu.memory_space<vmem>>, vector<1x32xf32>
    %64 = vector.broadcast %63 : vector<1x32xf32> to vector<32x32xf32>
    %65 = arith.addf %62, %64 : vector<32x32xf32>
    %66 = arith.addf %60, %65 : vector<32x32xf32>
    %cst_32 = arith.constant 0.000000e+00 : f32
    %67 = vector.broadcast %cst_32 : f32 to vector<32x32xf32>
    %68 = arith.maximumf %66, %67 : vector<32x32xf32>
    %c2_i32 = arith.constant 2 : i32
    %69 = tpu.dynamic_rotate %68 by %c2_i32 dim 0 : vector<32x32xf32>, i32 -> vector<32x32xf32>
    %70 = tpu.iota {dimensions = array<i32: 0>} : vector<32x32xi32>
    %c16_i32_33 = arith.constant 16 : i32
    %c0_i32_34 = arith.constant 0 : i32
    %71 = arith.cmpi eq, %c16_i32_33, %c0_i32_34 : i32
    %c1_i32_35 = arith.constant 1 : i32
    %72 = arith.select %71, %c1_i32_35, %c16_i32_33 : i32
    %73 = vector.broadcast %72 : i32 to vector<32x32xi32>
    %74 = arith.remsi %70, %73 : vector<32x32xi32>
    %c0_i32_36 = arith.constant 0 : i32
    %75 = vector.broadcast %c0_i32_36 : i32 to vector<32x32xi32>
    %76 = arith.cmpi ne, %74, %75 : vector<32x32xi32>
    %c0_i32_37 = arith.constant 0 : i32
    %77 = vector.broadcast %c0_i32_37 : i32 to vector<32x32xi32>
    %78 = arith.cmpi slt, %74, %77 : vector<32x32xi32>
    %c0_i32_38 = arith.constant 0 : i32
    %79 = arith.cmpi slt, %72, %c0_i32_38 : i32
    %80 = vector.broadcast %79 : i1 to vector<32x32xi1>
    %81 = vector.broadcast %80 : vector<32x32xi1> to vector<32x32xi1>
    %82 = arith.xori %78, %81 : vector<32x32xi1>
    %83 = arith.andi %82, %76 : vector<32x32xi1>
    %84 = vector.broadcast %72 : i32 to vector<32x32xi32>
    %85 = arith.addi %74, %84 : vector<32x32xi32>
    %86 = arith.select %83, %85, %74 : vector<32x32xi1>, vector<32x32xi32>
    %c2_i32_39 = arith.constant 2 : i32
    %87 = vector.broadcast %c2_i32_39 : i32 to vector<32x32xi32>
    %88 = arith.cmpi sge, %86, %87 : vector<32x32xi32>
    %cst_40 = arith.constant 0.000000e+00 : f32
    %89 = vector.broadcast %cst_40 : f32 to vector<32x32xf32>
    %90 = arith.select %88, %69, %89 : vector<32x32xi1>, vector<32x32xf32>
    %91 = tpu.concatenate %90, %68 in 1 : vector<32x32xf32>, vector<32x32xf32> -> vector<32x64xf32>
    %c0_41 = arith.constant 0 : index
    %c0_42 = arith.constant 0 : index
    %92 = vector.load %arg8[%c0_41, %c0_42] : memref<64x32xf32, #tpu.memory_space<vmem>>, vector<64x32xf32>
    %cst_43 = arith.constant dense<0.000000e+00> : vector<32x32xf32>
    %93 = tpu.matmul %91, %92, %cst_43 {dimension_numbers = #tpu.dot_dimension_numbers<[1], [0], [0], [1], [0, 0, 1, 1], [], []>} : vector<32x64xf32>, vector<64x32xf32>, vector<32x32xf32> -> vector<32x32xf32>
    %c0_44 = arith.constant 0 : index
    %c0_45 = arith.constant 0 : index
    %94 = vector.load %arg9[%c0_44, %c0_45] : memref<1x32xf32, #tpu.memory_space<vmem>>, vector<1x32xf32>
    %95 = vector.broadcast %94 : vector<1x32xf32> to vector<32x32xf32>
    %96 = arith.addf %93, %95 : vector<32x32xf32>
    %cst_46 = arith.constant 0.000000e+00 : f32
    %97 = vector.broadcast %cst_46 : f32 to vector<32x32xf32>
    %98 = arith.maximumf %96, %97 : vector<32x32xf32>
    %c2_i32_47 = arith.constant 2 : i32
    %99 = tpu.dynamic_rotate %98 by %c2_i32_47 dim 0 : vector<32x32xf32>, i32 -> vector<32x32xf32>
    %100 = tpu.iota {dimensions = array<i32: 0>} : vector<32x32xi32>
    %c16_i32_48 = arith.constant 16 : i32
    %c0_i32_49 = arith.constant 0 : i32
    %101 = arith.cmpi eq, %c16_i32_48, %c0_i32_49 : i32
    %c1_i32_50 = arith.constant 1 : i32
    %102 = arith.select %101, %c1_i32_50, %c16_i32_48 : i32
    %103 = vector.broadcast %102 : i32 to vector<32x32xi32>
    %104 = arith.remsi %100, %103 : vector<32x32xi32>
    %c0_i32_51 = arith.constant 0 : i32
    %105 = vector.broadcast %c0_i32_51 : i32 to vector<32x32xi32>
    %106 = arith.cmpi ne, %104, %105 : vector<32x32xi32>
    %c0_i32_52 = arith.constant 0 : i32
    %107 = vector.broadcast %c0_i32_52 : i32 to vector<32x32xi32>
    %108 = arith.cmpi slt, %104, %107 : vector<32x32xi32>
    %c0_i32_53 = arith.constant 0 : i32
    %109 = arith.cmpi slt, %102, %c0_i32_53 : i32
    %110 = vector.broadcast %109 : i1 to vector<32x32xi1>
    %111 = vector.broadcast %110 : vector<32x32xi1> to vector<32x32xi1>
    %112 = arith.xori %108, %111 : vector<32x32xi1>
    %113 = arith.andi %112, %106 : vector<32x32xi1>
    %114 = vector.broadcast %102 : i32 to vector<32x32xi32>
    %115 = arith.addi %104, %114 : vector<32x32xi32>
    %116 = arith.select %113, %115, %104 : vector<32x32xi1>, vector<32x32xi32>
    %c2_i32_54 = arith.constant 2 : i32
    %117 = vector.broadcast %c2_i32_54 : i32 to vector<32x32xi32>
    %118 = arith.cmpi sge, %116, %117 : vector<32x32xi32>
    %cst_55 = arith.constant 0.000000e+00 : f32
    %119 = vector.broadcast %cst_55 : f32 to vector<32x32xf32>
    %120 = arith.select %118, %99, %119 : vector<32x32xi1>, vector<32x32xf32>
    %121 = tpu.concatenate %120, %98 in 1 : vector<32x32xf32>, vector<32x32xf32> -> vector<32x64xf32>
    %c0_56 = arith.constant 0 : index
    %c0_57 = arith.constant 0 : index
    %122 = vector.load %arg10[%c0_56, %c0_57] : memref<64x32xf32, #tpu.memory_space<vmem>>, vector<64x32xf32>
    %cst_58 = arith.constant dense<0.000000e+00> : vector<32x32xf32>
    %123 = tpu.matmul %121, %122, %cst_58 {dimension_numbers = #tpu.dot_dimension_numbers<[1], [0], [0], [1], [0, 0, 1, 1], [], []>} : vector<32x64xf32>, vector<64x32xf32>, vector<32x32xf32> -> vector<32x32xf32>
    %c0_59 = arith.constant 0 : index
    %c0_60 = arith.constant 0 : index
    %124 = vector.load %arg11[%c0_59, %c0_60] : memref<1x32xf32, #tpu.memory_space<vmem>>, vector<1x32xf32>
    %125 = vector.broadcast %124 : vector<1x32xf32> to vector<32x32xf32>
    %126 = arith.addf %123, %125 : vector<32x32xf32>
    %cst_61 = arith.constant 0.000000e+00 : f32
    %127 = vector.broadcast %cst_61 : f32 to vector<32x32xf32>
    %128 = arith.maximumf %126, %127 : vector<32x32xf32>
    %129 = arith.addf %128, %68 : vector<32x32xf32>
    %cst_62 = arith.constant 0.000000e+00 : f32
    %130 = vector.broadcast %cst_62 : f32 to vector<32x32xf32>
    %131 = arith.maximumf %129, %130 : vector<32x32xf32>
    %c4_i32 = arith.constant 4 : i32
    %132 = tpu.dynamic_rotate %131 by %c4_i32 dim 0 : vector<32x32xf32>, i32 -> vector<32x32xf32>
    %133 = tpu.iota {dimensions = array<i32: 0>} : vector<32x32xi32>
    %c16_i32_63 = arith.constant 16 : i32
    %c0_i32_64 = arith.constant 0 : i32
    %134 = arith.cmpi eq, %c16_i32_63, %c0_i32_64 : i32
    %c1_i32_65 = arith.constant 1 : i32
    %135 = arith.select %134, %c1_i32_65, %c16_i32_63 : i32
    %136 = vector.broadcast %135 : i32 to vector<32x32xi32>
    %137 = arith.remsi %133, %136 : vector<32x32xi32>
    %c0_i32_66 = arith.constant 0 : i32
    %138 = vector.broadcast %c0_i32_66 : i32 to vector<32x32xi32>
    %139 = arith.cmpi ne, %137, %138 : vector<32x32xi32>
    %c0_i32_67 = arith.constant 0 : i32
    %140 = vector.broadcast %c0_i32_67 : i32 to vector<32x32xi32>
    %141 = arith.cmpi slt, %137, %140 : vector<32x32xi32>
    %c0_i32_68 = arith.constant 0 : i32
    %142 = arith.cmpi slt, %135, %c0_i32_68 : i32
    %143 = vector.broadcast %142 : i1 to vector<32x32xi1>
    %144 = vector.broadcast %143 : vector<32x32xi1> to vector<32x32xi1>
    %145 = arith.xori %141, %144 : vector<32x32xi1>
    %146 = arith.andi %145, %139 : vector<32x32xi1>
    %147 = vector.broadcast %135 : i32 to vector<32x32xi32>
    %148 = arith.addi %137, %147 : vector<32x32xi32>
    %149 = arith.select %146, %148, %137 : vector<32x32xi1>, vector<32x32xi32>
    %c4_i32_69 = arith.constant 4 : i32
    %150 = vector.broadcast %c4_i32_69 : i32 to vector<32x32xi32>
    %151 = arith.cmpi sge, %149, %150 : vector<32x32xi32>
    %cst_70 = arith.constant 0.000000e+00 : f32
    %152 = vector.broadcast %cst_70 : f32 to vector<32x32xf32>
    %153 = arith.select %151, %132, %152 : vector<32x32xi1>, vector<32x32xf32>
    %154 = tpu.concatenate %153, %131 in 1 : vector<32x32xf32>, vector<32x32xf32> -> vector<32x64xf32>
    %c0_71 = arith.constant 0 : index
    %c0_72 = arith.constant 0 : index
    %155 = vector.load %arg12[%c0_71, %c0_72] : memref<64x16xf32, #tpu.memory_space<vmem>>, vector<64x16xf32>
    %cst_73 = arith.constant dense<0.000000e+00> : vector<32x16xf32>
    %156 = tpu.matmul %154, %155, %cst_73 {dimension_numbers = #tpu.dot_dimension_numbers<[1], [0], [0], [1], [0, 0, 1, 1], [], []>} : vector<32x64xf32>, vector<64x16xf32>, vector<32x16xf32> -> vector<32x16xf32>
    %c0_74 = arith.constant 0 : index
    %c0_75 = arith.constant 0 : index
    %157 = vector.load %arg13[%c0_74, %c0_75] : memref<1x16xf32, #tpu.memory_space<vmem>>, vector<1x16xf32>
    %158 = vector.broadcast %157 : vector<1x16xf32> to vector<32x16xf32>
    %159 = arith.addf %156, %158 : vector<32x16xf32>
    %cst_76 = arith.constant 0.000000e+00 : f32
    %160 = vector.broadcast %cst_76 : f32 to vector<32x16xf32>
    %161 = arith.maximumf %159, %160 : vector<32x16xf32>
    %c4_i32_77 = arith.constant 4 : i32
    %162 = tpu.dynamic_rotate %161 by %c4_i32_77 dim 0 : vector<32x16xf32>, i32 -> vector<32x16xf32>
    %163 = tpu.iota {dimensions = array<i32: 0>} : vector<32x16xi32>
    %c16_i32_78 = arith.constant 16 : i32
    %c0_i32_79 = arith.constant 0 : i32
    %164 = arith.cmpi eq, %c16_i32_78, %c0_i32_79 : i32
    %c1_i32_80 = arith.constant 1 : i32
    %165 = arith.select %164, %c1_i32_80, %c16_i32_78 : i32
    %166 = vector.broadcast %165 : i32 to vector<32x16xi32>
    %167 = arith.remsi %163, %166 : vector<32x16xi32>
    %c0_i32_81 = arith.constant 0 : i32
    %168 = vector.broadcast %c0_i32_81 : i32 to vector<32x16xi32>
    %169 = arith.cmpi ne, %167, %168 : vector<32x16xi32>
    %c0_i32_82 = arith.constant 0 : i32
    %170 = vector.broadcast %c0_i32_82 : i32 to vector<32x16xi32>
    %171 = arith.cmpi slt, %167, %170 : vector<32x16xi32>
    %c0_i32_83 = arith.constant 0 : i32
    %172 = arith.cmpi slt, %165, %c0_i32_83 : i32
    %173 = vector.broadcast %172 : i1 to vector<32x16xi1>
    %174 = vector.broadcast %173 : vector<32x16xi1> to vector<32x16xi1>
    %175 = arith.xori %171, %174 : vector<32x16xi1>
    %176 = arith.andi %175, %169 : vector<32x16xi1>
    %177 = vector.broadcast %165 : i32 to vector<32x16xi32>
    %178 = arith.addi %167, %177 : vector<32x16xi32>
    %179 = arith.select %176, %178, %167 : vector<32x16xi1>, vector<32x16xi32>
    %c4_i32_84 = arith.constant 4 : i32
    %180 = vector.broadcast %c4_i32_84 : i32 to vector<32x16xi32>
    %181 = arith.cmpi sge, %179, %180 : vector<32x16xi32>
    %cst_85 = arith.constant 0.000000e+00 : f32
    %182 = vector.broadcast %cst_85 : f32 to vector<32x16xf32>
    %183 = arith.select %181, %162, %182 : vector<32x16xi1>, vector<32x16xf32>
    %184 = tpu.concatenate %183, %161 in 1 : vector<32x16xf32>, vector<32x16xf32> -> vector<32x32xf32>
    %c0_86 = arith.constant 0 : index
    %c0_87 = arith.constant 0 : index
    %185 = vector.load %arg14[%c0_86, %c0_87] : memref<32x16xf32, #tpu.memory_space<vmem>>, vector<32x16xf32>
    %cst_88 = arith.constant dense<0.000000e+00> : vector<32x16xf32>
    %186 = tpu.matmul %184, %185, %cst_88 {dimension_numbers = #tpu.dot_dimension_numbers<[1], [0], [0], [1], [0, 0, 1, 1], [], []>} : vector<32x32xf32>, vector<32x16xf32>, vector<32x16xf32> -> vector<32x16xf32>
    %c0_89 = arith.constant 0 : index
    %c0_90 = arith.constant 0 : index
    %187 = vector.load %arg15[%c0_89, %c0_90] : memref<1x16xf32, #tpu.memory_space<vmem>>, vector<1x16xf32>
    %188 = vector.broadcast %187 : vector<1x16xf32> to vector<32x16xf32>
    %189 = arith.addf %186, %188 : vector<32x16xf32>
    %cst_91 = arith.constant 0.000000e+00 : f32
    %190 = vector.broadcast %cst_91 : f32 to vector<32x16xf32>
    %191 = arith.maximumf %189, %190 : vector<32x16xf32>
    %c0_92 = arith.constant 0 : index
    %c0_93 = arith.constant 0 : index
    %192 = vector.load %arg16[%c0_92, %c0_93] : memref<32x16xf32, #tpu.memory_space<vmem>>, vector<32x16xf32>
    %cst_94 = arith.constant dense<0.000000e+00> : vector<32x16xf32>
    %193 = tpu.matmul %131, %192, %cst_94 {dimension_numbers = #tpu.dot_dimension_numbers<[1], [0], [0], [1], [0, 0, 1, 1], [], []>} : vector<32x32xf32>, vector<32x16xf32>, vector<32x16xf32> -> vector<32x16xf32>
    %c0_95 = arith.constant 0 : index
    %c0_96 = arith.constant 0 : index
    %194 = vector.load %arg17[%c0_95, %c0_96] : memref<1x16xf32, #tpu.memory_space<vmem>>, vector<1x16xf32>
    %195 = vector.broadcast %194 : vector<1x16xf32> to vector<32x16xf32>
    %196 = arith.addf %193, %195 : vector<32x16xf32>
    %197 = arith.addf %191, %196 : vector<32x16xf32>
    %cst_97 = arith.constant 0.000000e+00 : f32
    %198 = vector.broadcast %cst_97 : f32 to vector<32x16xf32>
    %199 = arith.maximumf %197, %198 : vector<32x16xf32>
    %200 = tpu.iota {dimensions = array<i32: 0>} : vector<2x32xi32>
    %201 = tpu.iota {dimensions = array<i32: 1>} : vector<2x32xi32>
    %c16_i32_98 = arith.constant 16 : i32
    %202 = vector.broadcast %c16_i32_98 : i32 to vector<2x32xi32>
    %203 = arith.muli %200, %202 : vector<2x32xi32>
    %c15_i32 = arith.constant 15 : i32
    %204 = vector.broadcast %c15_i32 : i32 to vector<2x32xi32>
    %205 = arith.addi %203, %204 : vector<2x32xi32>
    %206 = arith.cmpi eq, %201, %205 : vector<2x32xi32>
    %207 = arith.extui %206 : vector<2x32xi1> to vector<2x32xi32>
    %208 = arith.sitofp %207 : vector<2x32xi32> to vector<2x32xf32>
    %cst_99 = arith.constant dense<0.000000e+00> : vector<2x16xf32>
    %209 = tpu.matmul %208, %199, %cst_99 {dimension_numbers = #tpu.dot_dimension_numbers<[1], [0], [0], [1], [0, 0, 1, 1], [], []>} : vector<2x32xf32>, vector<32x16xf32>, vector<2x16xf32> -> vector<2x16xf32>
    %c0_100 = arith.constant 0 : index
    %c0_101 = arith.constant 0 : index
    %210 = vector.load %arg18[%c0_100, %c0_101] : memref<16x1xf32, #tpu.memory_space<vmem>>, vector<16x1xf32>
    %cst_102 = arith.constant dense<0.000000e+00> : vector<2x1xf32>
    %211 = tpu.matmul %209, %210, %cst_102 {dimension_numbers = #tpu.dot_dimension_numbers<[1], [0], [0], [1], [0, 0, 1, 1], [], []>} : vector<2x16xf32>, vector<16x1xf32>, vector<2x1xf32> -> vector<2x1xf32>
    %c0_103 = arith.constant 0 : index
    %c0_104 = arith.constant 0 : index
    %212 = vector.load %arg19[%c0_103, %c0_104] : memref<1x1xf32, #tpu.memory_space<vmem>>, vector<1x1xf32>
    %213 = vector.broadcast %212 : vector<1x1xf32> to vector<2x1xf32>
    %214 = arith.addf %211, %213 : vector<2x1xf32>
    %c0_105 = arith.constant 0 : index
    %c0_106 = arith.constant 0 : index
    %215 = vector.load %arg20[%c0_105, %c0_106] : memref<2x1xf32, #tpu.memory_space<vmem>>, vector<2x1xf32>
    tpu.vector_store %arg20[%c0_105, %c0_106], %214 {strides = array<i32>} : memref<2x1xf32, #tpu.memory_space<vmem>>, vector<2x1xf32>,
    return
  }
  func.func @transform_0(%arg0: i32) -> (i32, i32) {
    %c0_i32 = arith.constant 0 : i32
    %c0_i32_0 = arith.constant 0 : i32
    %c0_i32_1 = arith.constant 0 : i32
    return %c0_i32, %c0_i32_0 : i32, i32
  }
  func.func @transform_1(%arg0: i32) -> (i32, i32) {
    %c0_i32 = arith.constant 0 : i32
    %c0_i32_0 = arith.constant 0 : i32
    %c0_i32_1 = arith.constant 0 : i32
    return %c0_i32, %c0_i32_0 : i32, i32
  }
  func.func @transform_2(%arg0: i32) -> (i32, i32) {
    %c0_i32 = arith.constant 0 : i32
    %c0_i32_0 = arith.constant 0 : i32
    %c0_i32_1 = arith.constant 0 : i32
    return %c0_i32, %c0_i32_0 : i32, i32
  }
  func.func @transform_3(%arg0: i32) -> (i32, i32) {
    %c0_i32 = arith.constant 0 : i32
    %c0_i32_0 = arith.constant 0 : i32
    %c0_i32_1 = arith.constant 0 : i32
    return %c0_i32, %c0_i32_0 : i32, i32
  }
  func.func @transform_4(%arg0: i32) -> (i32, i32) {
    %c0_i32 = arith.constant 0 : i32
    %c0_i32_0 = arith.constant 0 : i32
    %c0_i32_1 = arith.constant 0 : i32
    return %c0_i32, %c0_i32_0 : i32, i32
  }
  func.func @transform_5(%arg0: i32) -> (i32, i32) {
    %c0_i32 = arith.constant 0 : i32
    %c0_i32_0 = arith.constant 0 : i32
    %c0_i32_1 = arith.constant 0 : i32
    return %c0_i32, %c0_i32_0 : i32, i32
  }
  func.func @transform_6(%arg0: i32) -> (i32, i32) {
    %c0_i32 = arith.constant 0 : i32
    %c0_i32_0 = arith.constant 0 : i32
    %c0_i32_1 = arith.constant 0 : i32
    return %c0_i32, %c0_i32_0 : i32, i32
  }
  func.func @transform_7(%arg0: i32) -> (i32, i32) {
    %c0_i32 = arith.constant 0 : i32
    %c0_i32_0 = arith.constant 0 : i32
    %c0_i32_1 = arith.constant 0 : i32
    return %c0_i32, %c0_i32_0 : i32, i32
  }
  func.func @transform_8(%arg0: i32) -> (i32, i32) {
    %c0_i32 = arith.constant 0 : i32
    %c0_i32_0 = arith.constant 0 : i32
    %c0_i32_1 = arith.constant 0 : i32
    return %c0_i32, %c0_i32_0 : i32, i32
  }
  func.func @transform_9(%arg0: i32) -> (i32, i32) {
    %c0_i32 = arith.constant 0 : i32
    %c0_i32_0 = arith.constant 0 : i32
    %c0_i32_1 = arith.constant 0 : i32
    return %c0_i32, %c0_i32_0 : i32, i32
  }
  func.func @transform_10(%arg0: i32) -> (i32, i32) {
    %c0_i32 = arith.constant 0 : i32
    %c0_i32_0 = arith.constant 0 : i32
    %c0_i32_1 = arith.constant 0 : i32
    return %c0_i32, %c0_i32_0 : i32, i32
  }
  func.func @transform_11(%arg0: i32) -> (i32, i32) {
    %c0_i32 = arith.constant 0 : i32
    %c0_i32_0 = arith.constant 0 : i32
    %c0_i32_1 = arith.constant 0 : i32
    return %c0_i32, %c0_i32_0 : i32, i32
  }
  func.func @transform_12(%arg0: i32) -> (i32, i32) {
    %c0_i32 = arith.constant 0 : i32
    %c0_i32_0 = arith.constant 0 : i32
    %c0_i32_1 = arith.constant 0 : i32
    return %c0_i32, %c0_i32_0 : i32, i32
  }
  func.func @transform_13(%arg0: i32) -> (i32, i32) {
    %c0_i32 = arith.constant 0 : i32
    %c0_i32_0 = arith.constant 0 : i32
    %c0_i32_1 = arith.constant 0 : i32
    return %c0_i32, %c0_i32_0 : i32, i32
  }
  func.func @transform_14(%arg0: i32) -> (i32, i32) {
    %c0_i32 = arith.constant 0 : i32
    %c0_i32_0 = arith.constant 0 : i32
    %c0_i32_1 = arith.constant 0 : i32
    return %c0_i32, %c0_i32_0 : i32, i32
  }
  func.func @transform_15(%arg0: i32) -> (i32, i32) {
    %c0_i32 = arith.constant 0 : i32
    %c0_i32_0 = arith.constant 0 : i32
    %c0_i32_1 = arith.constant 0 : i32
    return %c0_i32, %c0_i32_0 : i32, i32
  }
  func.func @transform_16(%arg0: i32) -> (i32, i32) {
    %c0_i32 = arith.constant 0 : i32
    %c0_i32_0 = arith.constant 0 : i32
    %c0_i32_1 = arith.constant 0 : i32
    return %c0_i32, %c0_i32_0 : i32, i32
  }
  func.func @transform_17(%arg0: i32) -> (i32, i32) {
    %c0_i32 = arith.constant 0 : i32
    %c0_i32_0 = arith.constant 0 : i32
    %c0_i32_1 = arith.constant 0 : i32
    return %c0_i32, %c0_i32_0 : i32, i32
  }
  func.func @transform_18(%arg0: i32) -> (i32, i32) {
    %c0_i32 = arith.constant 0 : i32
    %c0_i32_0 = arith.constant 0 : i32
    %c0_i32_1 = arith.constant 0 : i32
    return %c0_i32, %c0_i32_0 : i32, i32
  }
  func.func @transform_19(%arg0: i32) -> (i32, i32) {
    %c0_i32 = arith.constant 0 : i32
    %c0_i32_0 = arith.constant 0 : i32
    %c0_i32_1 = arith.constant 0 : i32
    return %c0_i32, %c0_i32_0 : i32, i32
  }
}

</mosaic_0001>

<llo_original>
// kernel: tpu_custom_call.1
$region0: #{tpu_custom_call.1}
  #allocation0 [shape = 'u32[]', space=smem, size = 0x4, offset = 0x4, fixed_abs, tag = 'smem constant byte address 0x4 - core index']
  #allocation1 [shape = 'u32[144,128]{1,0:T(1,128)}', space=vmem, size = 0x12000, scoped, tag = 'internal scratch']
  #allocation2 [shape = 'f32[1,1]{1,0:T(1,128)S(1)}', space=vmem, size = 0x200, scoped, tag = 'scoped memory for tpu_custom_call.1']
  %s0 = inlined_call_operand.vmem [shape: f32[32,128], index: 0, kind: input, shape index: {}]
  %s1 = inlined_call_operand.vmem [shape: f32[256,32], index: 1, kind: input, shape index: {}]
  %s2 = inlined_call_operand.vmem [shape: f32[1,32], index: 2, kind: input, shape index: {}]
  %s3 = inlined_call_operand.vmem [shape: f32[64,32], index: 3, kind: input, shape index: {}]
  %s4 = inlined_call_operand.vmem [shape: f32[1,32], index: 4, kind: input, shape index: {}]
  %s5 = inlined_call_operand.vmem [shape: f32[128,32], index: 5, kind: input, shape index: {}]
  %s6 = inlined_call_operand.vmem [shape: f32[1,32], index: 6, kind: input, shape index: {}]
  %s7 = inlined_call_operand.vmem [shape: f32[64,32], index: 7, kind: input, shape index: {}]
  %s8 = inlined_call_operand.vmem [shape: f32[1,32], index: 8, kind: input, shape index: {}]
  %s9 = inlined_call_operand.vmem [shape: f32[64,32], index: 9, kind: input, shape index: {}]
  %s10 = inlined_call_operand.vmem [shape: f32[1,32], index: 10, kind: input, shape index: {}]
  %s11 = inlined_call_operand.vmem [shape: f32[64,16], index: 11, kind: input, shape index: {}]
  %s12 = inlined_call_operand.vmem [shape: f32[1,16], index: 12, kind: input, shape index: {}]
  %s13 = inlined_call_operand.vmem [shape: f32[32,16], index: 13, kind: input, shape index: {}]
  %s14 = inlined_call_operand.vmem [shape: f32[1,16], index: 14, kind: input, shape index: {}]
  %s15 = inlined_call_operand.vmem [shape: f32[32,16], index: 15, kind: input, shape index: {}]
  %s16 = inlined_call_operand.vmem [shape: f32[1,16], index: 16, kind: input, shape index: {}]
  %s17 = inlined_call_operand.vmem [shape: f32[16,1], index: 17, kind: input, shape index: {}]
  %s18 = inlined_call_operand.<no memory space> [shape: f32[1,1], index: 18, kind: input, shape index: {}]
  %s19 = inlined_call_operand.vmem [shape: f32[2,1], index: 19, kind: output, shape index: {}]
  %s20 = sld [smem:[#allocation0]]
  $region86: #{tpu_custom_call.1} parent=0
    _
  %s22 = ssub.s32 1, %s20
  %s23 = scalar_select 0, %s22, %s20
  %v24 = vstv %s18
  %25 = vst [vmem:[#allocation2] sm:$0x1] %v24
  // Predicated region
  $region2: #{tpu_custom_call.1} parent=0 // pred_check
    _
  $region3: #{tpu_custom_call.1} parent=0 // pred_check_branch
    %27 = sbr.rel (0) target = $region5
  $region4: #{tpu_custom_call.1} parent=0 // pred_region
    _
  $region5: #{tpu_custom_call.1} parent=0 // pred_fallthru
    _
  // Predicated region
  $region6: #{tpu_custom_call.1} parent=0 // pred_check
    _
  $region7: #{tpu_custom_call.1} parent=0 // pred_check_branch
    %29 = sbr.rel (0) target = $region9
  $region8: #{tpu_custom_call.1} parent=0 // pred_region
    _
  $region9: #{tpu_custom_call.1} parent=0 // pred_fallthru
    _
  // Predicated region
  $region10: #{tpu_custom_call.1} parent=0 // pred_check
    _
  $region11: #{tpu_custom_call.1} parent=0 // pred_check_branch
    %31 = sbr.rel (0) target = $region13
  $region12: #{tpu_custom_call.1} parent=0 // pred_region
    _
  $region13: #{tpu_custom_call.1} parent=0 // pred_fallthru
    _
  // Predicated region
  $region14: #{tpu_custom_call.1} parent=0 // pred_check
    _
  $region15: #{tpu_custom_call.1} parent=0 // pred_check_branch
    %33 = sbr.rel (0) target = $region17
  $region16: #{tpu_custom_call.1} parent=0 // pred_region
    _
  $region17: #{tpu_custom_call.1} parent=0 // pred_fallthru
    _
  // Predicated region
  $region18: #{tpu_custom_call.1} parent=0 // pred_check
    _
  $region19: #{tpu_custom_call.1} parent=0 // pred_check_branch
    %35 = sbr.rel (0) target = $region21
  $region20: #{tpu_custom_call.1} parent=0 // pred_region
    _
  $region21: #{tpu_custom_call.1} parent=0 // pred_fallthru
    _
  // Predicated region
  $region22: #{tpu_custom_call.1} parent=0 // pred_check
    _
  $region23: #{tpu_custom_call.1} parent=0 // pred_check_branch
    %37 = sbr.rel (0) target = $region25
  $region24: #{tpu_custom_call.1} parent=0 // pred_region
    _
  $region25: #{tpu_custom_call.1} parent=0 // pred_fallthru
    _
  // Predicated region
  $region26: #{tpu_custom_call.1} parent=0 // pred_check
    _
  $region27: #{tpu_custom_call.1} parent=0 // pred_check_branch
    %39 = sbr.rel (0) target = $region29
  $region28: #{tpu_custom_call.1} parent=0 // pred_region
    _
  $region29: #{tpu_custom_call.1} parent=0 // pred_fallthru
    _
  // Predicated region
  $region30: #{tpu_custom_call.1} parent=0 // pred_check
    _
  $region31: #{tpu_custom_call.1} parent=0 // pred_check_branch
    %41 = sbr.rel (0) target = $region33
  $region32: #{tpu_custom_call.1} parent=0 // pred_region
    _
  $region33: #{tpu_custom_call.1} parent=0 // pred_fallthru
    _
  // Predicated region
  $region34: #{tpu_custom_call.1} parent=0 // pred_check
    _
  $region35: #{tpu_custom_call.1} parent=0 // pred_check_branch
    %43 = sbr.rel (0) target = $region37
  $region36: #{tpu_custom_call.1} parent=0 // pred_region
    _
  $region37: #{tpu_custom_call.1} parent=0 // pred_fallthru
    _
  // Predicated region
  $region38: #{tpu_custom_call.1} parent=0 // pred_check
    _
  $region39: #{tpu_custom_call.1} parent=0 // pred_check_branch
    %45 = sbr.rel (0) target = $region41
  $region40: #{tpu_custom_call.1} parent=0 // pred_region
    _
  $region41: #{tpu_custom_call.1} parent=0 // pred_fallthru
    _
  // Predicated region
  $region42: #{tpu_custom_call.1} parent=0 // pred_check
    _
  $region43: #{tpu_custom_call.1} parent=0 // pred_check_branch
    %47 = sbr.rel (0) target = $region45
  $region44: #{tpu_custom_call.1} parent=0 // pred_region
    _
  $region45: #{tpu_custom_call.1} parent=0 // pred_fallthru
    _
  // Predicated region
  $region46: #{tpu_custom_call.1} parent=0 // pred_check
    _
  $region47: #{tpu_custom_call.1} parent=0 // pred_check_branch
    %49 = sbr.rel (0) target = $region49
  $region48: #{tpu_custom_call.1} parent=0 // pred_region
    _
  $region49: #{tpu_custom_call.1} parent=0 // pred_fallthru
    _
  // Predicated region
  $region50: #{tpu_custom_call.1} parent=0 // pred_check
    _
  $region51: #{tpu_custom_call.1} parent=0 // pred_check_branch
    %51 = sbr.rel (0) target = $region53
  $region52: #{tpu_custom_call.1} parent=0 // pred_region
    _
  $region53: #{tpu_custom_call.1} parent=0 // pred_fallthru
    _
  // Predicated region
  $region54: #{tpu_custom_call.1} parent=0 // pred_check
    _
  $region55: #{tpu_custom_call.1} parent=0 // pred_check_branch
    %53 = sbr.rel (0) target = $region57
  $region56: #{tpu_custom_call.1} parent=0 // pred_region
    _
  $region57: #{tpu_custom_call.1} parent=0 // pred_fallthru
    _
  // Predicated region
  $region58: #{tpu_custom_call.1} parent=0 // pred_check
    _
  $region59: #{tpu_custom_call.1} parent=0 // pred_check_branch
    %55 = sbr.rel (0) target = $region61
  $region60: #{tpu_custom_call.1} parent=0 // pred_region
    _
  $region61: #{tpu_custom_call.1} parent=0 // pred_fallthru
    _
  // Predicated region
  $region62: #{tpu_custom_call.1} parent=0 // pred_check
    _
  $region63: #{tpu_custom_call.1} parent=0 // pred_check_branch
    %57 = sbr.rel (0) target = $region65
  $region64: #{tpu_custom_call.1} parent=0 // pred_region
    _
  $region65: #{tpu_custom_call.1} parent=0 // pred_fallthru
    _
  // Predicated region
  $region66: #{tpu_custom_call.1} parent=0 // pred_check
    _
  $region67: #{tpu_custom_call.1} parent=0 // pred_check_branch
    %59 = sbr.rel (0) target = $region69
  $region68: #{tpu_custom_call.1} parent=0 // pred_region
    _
  $region69: #{tpu_custom_call.1} parent=0 // pred_fallthru
    _
  // Predicated region
  $region70: #{tpu_custom_call.1} parent=0 // pred_check
    _
  $region71: #{tpu_custom_call.1} parent=0 // pred_check_branch
    %61 = sbr.rel (0) target = $region73
  $region72: #{tpu_custom_call.1} parent=0 // pred_region
    _
  $region73: #{tpu_custom_call.1} parent=0 // pred_fallthru
    _
  // Predicated region
  $region74: #{tpu_custom_call.1} parent=0 // pred_check
    _
  $region75: #{tpu_custom_call.1} parent=0 // pred_check_branch
    %63 = sbr.rel (0) target = $region77
  $region76: #{tpu_custom_call.1} parent=0 // pred_region
    _
  $region77: #{tpu_custom_call.1} parent=0 // pred_fallthru
    _
  %v64 = vld [vmem:[%s0] sm:$0xff]
  %v65 = vld [vmem:[%s0 + $0x8] sm:$0xff]
  %v66 = vld [vmem:[%s0 + $0x10] sm:$0xff]
  %v67 = vld [vmem:[%s0 + $0x18] sm:$0xff]
  %v68 = vrot.slane %v64, 7
  %v69 = vrot.slane %v65, 7
  %v70 = vrot.slane %v66, 7
  %v71 = vrot.slane %v67, 7
  %v72 = vlaneseq
  %v73 = vshrl.u32 %v72, 7
  %vm74 = vcmp.lt.s32.totalorder %v73, 1
  %v75 = vsel %vm74, %v70, %v71
  %v76 = vsel %vm74, %v69, %v70
  %v77 = vsel %vm74, %v68, %v69
  %v78 = vsel %vm74, %v71, %v68
  %v79 = vadd.s32 %v73, 8
  %v80 = vadd.s32 %v73, 16
  %v81 = vadd.s32 %v73, 24
  %vm82 = vcmp.lt.s32.totalorder %v73, 0
  %v83 = vsub.s32 0, %v73
  %v84 = vsel %vm82, %v83, %v73
  %v85 = vshrl.u32 %v84, 4
  %v86 = vand.u32 %v84, 15
  %v87 = vsub.s32 0, %v86
  %v88 = vsel %vm82, %v87, %v86
  %vm89 = vcmp.lt.s32.totalorder %v79, 0
  %v90 = vsub.s32 0, %v79
  %v91 = vsel %vm89, %v90, %v79
  %v92 = vshrl.u32 %v91, 4
  %v93 = vand.u32 %v91, 15
  %v94 = vsub.s32 0, %v93
  %v95 = vsel %vm89, %v94, %v93
  %vm96 = vcmp.lt.s32.totalorder %v80, 0
  %v97 = vsub.s32 0, %v80
  %v98 = vsel %vm96, %v97, %v80
  %v99 = vshrl.u32 %v98, 4
  %v100 = vand.u32 %v98, 15
  %v101 = vsub.s32 0, %v100
  %v102 = vsel %vm96, %v101, %v100
  %vm103 = vcmp.lt.s32.totalorder %v81, 0
  %v104 = vsub.s32 0, %v81
  %v105 = vsel %vm103, %v104, %v81
  %v106 = vshrl.u32 %v105, 4
  %v107 = vand.u32 %v105, 15
  %v108 = vsub.s32 0, %v107
  %v109 = vsel %vm103, %v108, %v107
  %vm110 = vcmp.ne.s32.totalorder %v88, 0
  %vm111 = vcmp.ne.s32.totalorder %v95, 0
  %vm112 = vcmp.ne.s32.totalorder %v102, 0
  %vm113 = vcmp.ne.s32.totalorder %v109, 0
  %vm114 = vcmp.lt.s32.totalorder %v88, 0
  %vm115 = vcmp.lt.s32.totalorder %v95, 0
  %vm116 = vcmp.lt.s32.totalorder %v102, 0
  %vm117 = vcmp.lt.s32.totalorder %v109, 0
  %vm118 = vmand %vm114, %vm110
  %vm119 = vmand %vm115, %vm111
  %vm120 = vmand %vm116, %vm112
  %vm121 = vmand %vm117, %vm113
  %v122 = vadd.s32 %v88, 16
  %v123 = vadd.s32 %v95, 16
  %v124 = vadd.s32 %v102, 16
  %v125 = vadd.s32 %v109, 16
  %v126 = vsel %vm118, %v122, %v88
  %v127 = vsel %vm119, %v123, %v95
  %v128 = vsel %vm120, %v124, %v102
  %v129 = vsel %vm121, %v125, %v109
  %vm130 = vcmp.ge.s32.totalorder %v126, 1
  %vm131 = vcmp.ge.s32.totalorder %v127, 1
  %vm132 = vcmp.ge.s32.totalorder %v128, 1
  %vm133 = vcmp.ge.s32.totalorder %v129, 1
  %v134 = vsel %vm130, %v78, 0.0
  %v135 = vsel %vm131, %v77, 0.0
  %v136 = vsel %vm132, %v76, 0.0
  %v137 = vsel %vm133, %v75, 0.0
  %v138 = vld [vmem:[%s1] sm:$0xff]
  %v139 = vld [vmem:[%s1 + $0x8] sm:$0xff]
  %v140 = vld [vmem:[%s1 + $0x10] sm:$0xff]
  %v141 = vld [vmem:[%s1 + $0x18] sm:$0xff]
  %v142 = vld [vmem:[%s1 + $0x20] sm:$0xff]
  %v143 = vld [vmem:[%s1 + $0x28] sm:$0xff]
  %v144 = vld [vmem:[%s1 + $0x30] sm:$0xff]
  %v145 = vld [vmem:[%s1 + $0x38] sm:$0xff]
  %v146 = vld [vmem:[%s1 + $0x40] sm:$0xff]
  %v147 = vld [vmem:[%s1 + $0x48] sm:$0xff]
  %v148 = vld [vmem:[%s1 + $0x50] sm:$0xff]
  %v149 = vld [vmem:[%s1 + $0x58] sm:$0xff]
  %v150 = vld [vmem:[%s1 + $0x60] sm:$0xff]
  %v151 = vld [vmem:[%s1 + $0x68] sm:$0xff]
  %v152 = vld [vmem:[%s1 + $0x70] sm:$0xff]
  %v153 = vld [vmem:[%s1 + $0x78] sm:$0xff]
  %v154 = vld [vmem:[%s1 + $0x80] sm:$0xff]
  %v155 = vld [vmem:[%s1 + $0x88] sm:$0xff]
  %v156 = vld [vmem:[%s1 + $0x90] sm:$0xff]
  %v157 = vld [vmem:[%s1 + $0x98] sm:$0xff]
  %v158 = vld [vmem:[%s1 + $0xa0] sm:$0xff]
  %v159 = vld [vmem:[%s1 + $0xa8] sm:$0xff]
  %v160 = vld [vmem:[%s1 + $0xb0] sm:$0xff]
  %v161 = vld [vmem:[%s1 + $0xb8] sm:$0xff]
  %v162 = vld [vmem:[%s1 + $0xc0] sm:$0xff]
  %v163 = vld [vmem:[%s1 + $0xc8] sm:$0xff]
  %v164 = vld [vmem:[%s1 + $0xd0] sm:$0xff]
  %v165 = vld [vmem:[%s1 + $0xd8] sm:$0xff]
  %v166 = vld [vmem:[%s1 + $0xe0] sm:$0xff]
  %v167 = vld [vmem:[%s1 + $0xe8] sm:$0xff]
  %v168 = vld [vmem:[%s1 + $0xf0] sm:$0xff]
  %v169 = vld [vmem:[%s1 + $0xf8] sm:$0xff]
  %v170 = vld [vmem:[%s2] sm:$0x1]
  %v172 = vlaneseq
  %v173 = vshrl.u32 %v172, 7
  %v174 = vsub.s32 0, %v173
  %v175 = vrot.slane %v170, %v174
  %177 = vmatprep.subr.mxu0 0.0
  %178 = vmatpush1.msra.mxu0 %v138
  %179 = vmatprep.subr.mxu0 0.0
  %180 = vmatpush1.msra.mxu0 %v139
  %181 = vmatprep.subr.mxu0 0.0
  %182 = vmatpush1.msra.mxu0 %v140
  %183 = vmatprep.subr.mxu0 0.0
  %184 = vmatpush1.msra.mxu0 %v141
  %185 = vmatprep.subr.mxu0 0.0
  %186 = vmatpush1.msra.mxu0 %v142
  %187 = vmatprep.subr.mxu0 0.0
  %188 = vmatpush1.msra.mxu0 %v143
  %189 = vmatprep.subr.mxu0 0.0
  %190 = vmatpush1.msra.mxu0 %v144
  %191 = vmatprep.subr.mxu0 0.0
  %192 = vmatpush1.msra.mxu0 %v145
  %193 = vmatprep.subr.mxu0 0.0
  %194 = vmatpush1.msra.mxu0 %v146
  %195 = vmatprep.subr.mxu0 0.0
  %196 = vmatpush1.msra.mxu0 %v147
  %197 = vmatprep.subr.mxu0 0.0
  %198 = vmatpush1.msra.mxu0 %v148
  %199 = vmatprep.subr.mxu0 0.0
  %200 = vmatpush1.msra.mxu0 %v149
  %201 = vmatprep.subr.mxu0 0.0
  %202 = vmatpush1.msra.mxu0 %v150
  %203 = vmatprep.subr.mxu0 0.0
  %204 = vmatpush1.msra.mxu0 %v151
  %205 = vmatprep.subr.mxu0 0.0
  %206 = vmatpush1.msra.mxu0 %v152
  %207 = vmatprep.subr.mxu0 0.0
  %208 = vmatpush1.msra.mxu0 %v153
  %209 = vmatprep.subr.mxu0 0.0
  %210 = vmatpush1.msra.mxu0 %v154
  %211 = vmatprep.subr.mxu0 0.0
  %212 = vmatpush1.msra.mxu0 %v155
  %213 = vmatprep.subr.mxu0 0.0
  %214 = vmatpush1.msra.mxu0 %v156
  %215 = vmatprep.subr.mxu0 0.0
  %216 = vmatpush1.msra.mxu0 %v157
  %217 = vmatprep.subr.mxu0 0.0
  %218 = vmatpush1.msra.mxu0 %v158
  %219 = vmatprep.subr.mxu0 0.0
  %220 = vmatpush1.msra.mxu0 %v159
  %221 = vmatprep.subr.mxu0 0.0
  %222 = vmatpush1.msra.mxu0 %v160
  %223 = vmatprep.subr.mxu0 0.0
  %224 = vmatpush1.msra.mxu0 %v161
  %225 = vmatprep.subr.mxu0 0.0
  %226 = vmatpush1.msra.mxu0 %v162
  %227 = vmatprep.subr.mxu0 0.0
  %228 = vmatpush1.msra.mxu0 %v163
  %229 = vmatprep.subr.mxu0 0.0
  %230 = vmatpush1.msra.mxu0 %v164
  %231 = vmatprep.subr.mxu0 0.0
  %232 = vmatpush1.msra.mxu0 %v165
  %233 = vmatprep.subr.mxu0 0.0
  %234 = vmatpush1.msra.mxu0 %v166
  %235 = vmatprep.subr.mxu0 0.0
  %236 = vmatpush1.msra.mxu0 %v167
  %237 = vmatprep.subr.mxu0 0.0
  %238 = vmatpush1.msra.mxu0 %v168
  %239 = vmatprep.subr.mxu0 0.0
  %240 = vmatpush1.msra.mxu0 %v169
  %241 = vmatprep.mubr.f32.mxu0 %v64
  %242 = vmatmul.mubr.f32.gmra.mrb[0].mxu0 %v134
  %v243 = vpop.f32.mrb[0].mxu0
  %v244 = vadd.f32 %v175, %v243
  %v245 = vpop.f32.mrb[0].mxu0
  %246 = vmatprep.mubr.f32.mxu0 %v65
  %247 = vmatmul.mubr.f32.gmra.mrb[0].mxu0 %v135
  %v248 = vpop.f32.mrb[0].mxu0
  %v249 = vadd.f32 %v175, %v248
  %v250 = vpop.f32.mrb[0].mxu0
  %251 = vmatprep.mubr.f32.mxu0 %v66
  %252 = vmatmul.mubr.f32.gmra.mrb[0].mxu0 %v136
  %v253 = vpop.f32.mrb[0].mxu0
  %v254 = vadd.f32 %v175, %v253
  %v255 = vpop.f32.mrb[0].mxu0
  %256 = vmatprep.mubr.f32.mxu0 %v67
  %257 = vmatmul.mubr.f32.gmra.mrb[0].mxu0 %v137
  %v258 = vpop.f32.mrb[0].mxu0
  %v259 = vadd.f32 %v175, %v258
  %v260 = vpop.f32.mrb[0].mxu0
  %261 = vdwg.mxu0
  %v262 = vmax.f32 %v244, 0.0
  %v263 = vmax.f32 %v249, 0.0
  %v264 = vmax.f32 %v254, 0.0
  %v265 = vmax.f32 %v259, 0.0
  %v266 = vrot.slane %v262, 7
  %v267 = vrot.slane %v263, 7
  %v268 = vrot.slane %v264, 7
  %v269 = vrot.slane %v265, 7
  %v270 = vsel %vm74, %v268, %v269
  %v271 = vsel %vm74, %v267, %v268
  %v272 = vsel %vm74, %v266, %v267
  %v273 = vsel %vm74, %v269, %v266
  %v274 = vsel %vm130, %v273, 0.0
  %v275 = vsel %vm131, %v272, 0.0
  %v276 = vsel %vm132, %v271, 0.0
  %v277 = vsel %vm133, %v270, 0.0
  %282 = vrot.lane.b32.xlu0 %v262, 32
  %v283 = vpop.permute.xlu0 %282
  %284 = vrot.lane.b32.xlu0 %v263, 32
  %v285 = vpop.permute.xlu0 %284
  %286 = vrot.lane.b32.xlu0 %v264, 32
  %v287 = vpop.permute.xlu0 %286
  %288 = vrot.lane.b32.xlu0 %v265, 32
  %v289 = vpop.permute.xlu0 %288
  %vm294 = vcmask 261120
  %v295 = vsel %vm294, %v274, %v283
  %v296 = vsel %vm294, %v275, %v285
  %v297 = vsel %vm294, %v276, %v287
  %v298 = vsel %vm294, %v277, %v289
  %v299 = vld [vmem:[%s3] sm:$0xff]
  %v300 = vld [vmem:[%s3 + $0x8] sm:$0xff]
  %v301 = vld [vmem:[%s3 + $0x10] sm:$0xff]
  %v302 = vld [vmem:[%s3 + $0x18] sm:$0xff]
  %v303 = vld [vmem:[%s3 + $0x20] sm:$0xff]
  %v304 = vld [vmem:[%s3 + $0x28] sm:$0xff]
  %v305 = vld [vmem:[%s3 + $0x30] sm:$0xff]
  %v306 = vld [vmem:[%s3 + $0x38] sm:$0xff]
  %v307 = vld [vmem:[%s4] sm:$0x1]
  %v309 = vlaneseq
  %v310 = vshrl.u32 %v309, 7
  %v311 = vsub.s32 0, %v310
  %v312 = vrot.slane %v307, %v311
  %vm314 = vcmask 523264
  %v316 = vsel %vm314, %v295, 0
  %v319 = vsel %vm314, %v296, 0
  %v322 = vsel %vm314, %v297, 0
  %v325 = vsel %vm314, %v298, 0
  %327 = vmatprep.subr.mxu0 0.0
  %328 = vmatpush1.msra.mxu0 %v299
  %329 = vmatprep.subr.mxu0 0.0
  %330 = vmatpush1.msra.mxu0 %v300
  %331 = vmatprep.subr.mxu0 0.0
  %332 = vmatpush1.msra.mxu0 %v301
  %333 = vmatprep.subr.mxu0 0.0
  %334 = vmatpush1.msra.mxu0 %v302
  %335 = vmatprep.subr.mxu0 0.0
  %336 = vmatpush1.msra.mxu0 %v303
  %337 = vmatprep.subr.mxu0 0.0
  %338 = vmatpush1.msra.mxu0 %v304
  %339 = vmatprep.subr.mxu0 0.0
  %340 = vmatpush1.msra.mxu0 %v305
  %341 = vmatprep.subr.mxu0 0.0
  %342 = vmatpush1.msra.mxu0 %v306
  %343 = vmatprep.subr.mxu0 0.0
  %344 = vmatpush1.msra.mxu0 0.0
  %345 = vmatprep.subr.mxu0 0.0
  %346 = vmatpush1.msra.mxu0 0.0
  %347 = vmatprep.subr.mxu0 0.0
  %348 = vmatpush1.msra.mxu0 0.0
  %349 = vmatprep.subr.mxu0 0.0
  %350 = vmatpush1.msra.mxu0 0.0
  %351 = vmatprep.subr.mxu0 0.0
  %352 = vmatpush1.msra.mxu0 0.0
  %353 = vmatprep.subr.mxu0 0.0
  %354 = vmatpush1.msra.mxu0 0.0
  %355 = vmatprep.subr.mxu0 0.0
  %356 = vmatpush1.msra.mxu0 0.0
  %357 = vmatprep.subr.mxu0 0.0
  %358 = vmatpush1.msra.mxu0 0.0
  %359 = vmatprep.subr.mxu0 0.0
  %360 = vmatpush1.msra.mxu0 0.0
  %361 = vmatprep.subr.mxu0 0.0
  %362 = vmatpush1.msra.mxu0 0.0
  %363 = vmatprep.subr.mxu0 0.0
  %364 = vmatpush1.msra.mxu0 0.0
  %365 = vmatprep.subr.mxu0 0.0
  %366 = vmatpush1.msra.mxu0 0.0
  %367 = vmatprep.subr.mxu0 0.0
  %368 = vmatpush1.msra.mxu0 0.0
  %369 = vmatprep.subr.mxu0 0.0
  %370 = vmatpush1.msra.mxu0 0.0
  %371 = vmatprep.subr.mxu0 0.0
  %372 = vmatpush1.msra.mxu0 0.0
  %373 = vmatprep.subr.mxu0 0.0
  %374 = vmatpush1.msra.mxu0 0.0
  %375 = vmatprep.subr.mxu0 0.0
  %376 = vmatpush1.msra.mxu0 0.0
  %377 = vmatprep.subr.mxu0 0.0
  %378 = vmatpush1.msra.mxu0 0.0
  %379 = vmatprep.subr.mxu0 0.0
  %380 = vmatpush1.msra.mxu0 0.0
  %381 = vmatprep.subr.mxu0 0.0
  %382 = vmatpush1.msra.mxu0 0.0
  %383 = vmatprep.subr.mxu0 0.0
  %384 = vmatpush1.msra.mxu0 0.0
  %385 = vmatprep.subr.mxu0 0.0
  %386 = vmatpush1.msra.mxu0 0.0
  %387 = vmatprep.subr.mxu0 0.0
  %388 = vmatpush1.msra.mxu0 0.0
  %389 = vmatprep.subr.mxu0 0.0
  %390 = vmatpush1.msra.mxu0 0.0
  %391 = vmatprep.mubr.f32.mxu0 0.0
  %392 = vmatmul.mubr.f32.gmra.mrb[0].mxu0 %v316
  %v393 = vpop.f32.mrb[0].mxu0
  %v394 = vadd.f32 %v312, %v393
  %v395 = vpop.f32.mrb[0].mxu0
  %396 = vmatprep.mubr.f32.mxu0 0.0
  %397 = vmatmul.mubr.f32.gmra.mrb[0].mxu0 %v319
  %v398 = vpop.f32.mrb[0].mxu0
  %v399 = vadd.f32 %v312, %v398
  %v400 = vpop.f32.mrb[0].mxu0
  %401 = vmatprep.mubr.f32.mxu0 0.0
  %402 = vmatmul.mubr.f32.gmra.mrb[0].mxu0 %v322
  %v403 = vpop.f32.mrb[0].mxu0
  %v404 = vadd.f32 %v312, %v403
  %v405 = vpop.f32.mrb[0].mxu0
  %406 = vmatprep.mubr.f32.mxu0 0.0
  %407 = vmatmul.mubr.f32.gmra.mrb[0].mxu0 %v325
  %v408 = vpop.f32.mrb[0].mxu0
  %v409 = vadd.f32 %v312, %v408
  %v410 = vpop.f32.mrb[0].mxu0
  %411 = vdwg.mxu0
  %v412 = vmax.f32 %v394, 0.0
  %v413 = vmax.f32 %v399, 0.0
  %v414 = vmax.f32 %v404, 0.0
  %v415 = vmax.f32 %v409, 0.0
  %v416 = vld [vmem:[%s5] sm:$0xff]
  %v417 = vld [vmem:[%s5 + $0x8] sm:$0xff]
  %v418 = vld [vmem:[%s5 + $0x10] sm:$0xff]
  %v419 = vld [vmem:[%s5 + $0x18] sm:$0xff]
  %v420 = vld [vmem:[%s5 + $0x20] sm:$0xff]
  %v421 = vld [vmem:[%s5 + $0x28] sm:$0xff]
  %v422 = vld [vmem:[%s5 + $0x30] sm:$0xff]
  %v423 = vld [vmem:[%s5 + $0x38] sm:$0xff]
  %v424 = vld [vmem:[%s5 + $0x40] sm:$0xff]
  %v425 = vld [vmem:[%s5 + $0x48] sm:$0xff]
  %v426 = vld [vmem:[%s5 + $0x50] sm:$0xff]
  %v427 = vld [vmem:[%s5 + $0x58] sm:$0xff]
  %v428 = vld [vmem:[%s5 + $0x60] sm:$0xff]
  %v429 = vld [vmem:[%s5 + $0x68] sm:$0xff]
  %v430 = vld [vmem:[%s5 + $0x70] sm:$0xff]
  %v431 = vld [vmem:[%s5 + $0x78] sm:$0xff]
  %v432 = vld [vmem:[%s6] sm:$0x1]
  %v434 = vlaneseq
  %v435 = vshrl.u32 %v434, 7
  %v436 = vsub.s32 0, %v435
  %v437 = vrot.slane %v432, %v436
  %439 = vmatprep.subr.mxu0 0.0
  %440 = vmatpush1.msra.mxu0 %v416
  %441 = vmatprep.subr.mxu0 0.0
  %442 = vmatpush1.msra.mxu0 %v417
  %443 = vmatprep.subr.mxu0 0.0
  %444 = vmatpush1.msra.mxu0 %v418
  %445 = vmatprep.subr.mxu0 0.0
  %446 = vmatpush1.msra.mxu0 %v419
  %447 = vmatprep.subr.mxu0 0.0
  %448 = vmatpush1.msra.mxu0 %v420
  %449 = vmatprep.subr.mxu0 0.0
  %450 = vmatpush1.msra.mxu0 %v421
  %451 = vmatprep.subr.mxu0 0.0
  %452 = vmatpush1.msra.mxu0 %v422
  %453 = vmatprep.subr.mxu0 0.0
  %454 = vmatpush1.msra.mxu0 %v423
  %455 = vmatprep.subr.mxu0 0.0
  %456 = vmatpush1.msra.mxu0 %v424
  %457 = vmatprep.subr.mxu0 0.0
  %458 = vmatpush1.msra.mxu0 %v425
  %459 = vmatprep.subr.mxu0 0.0
  %460 = vmatpush1.msra.mxu0 %v426
  %461 = vmatprep.subr.mxu0 0.0
  %462 = vmatpush1.msra.mxu0 %v427
  %463 = vmatprep.subr.mxu0 0.0
  %464 = vmatpush1.msra.mxu0 %v428
  %465 = vmatprep.subr.mxu0 0.0
  %466 = vmatpush1.msra.mxu0 %v429
  %467 = vmatprep.subr.mxu0 0.0
  %468 = vmatpush1.msra.mxu0 %v430
  %469 = vmatprep.subr.mxu0 0.0
  %470 = vmatpush1.msra.mxu0 %v431
  %471 = vmatprep.subr.mxu0 0.0
  %472 = vmatpush1.msra.mxu0 0.0
  %473 = vmatprep.subr.mxu0 0.0
  %474 = vmatpush1.msra.mxu0 0.0
  %475 = vmatprep.subr.mxu0 0.0
  %476 = vmatpush1.msra.mxu0 0.0
  %477 = vmatprep.subr.mxu0 0.0
  %478 = vmatpush1.msra.mxu0 0.0
  %479 = vmatprep.subr.mxu0 0.0
  %480 = vmatpush1.msra.mxu0 0.0
  %481 = vmatprep.subr.mxu0 0.0
  %482 = vmatpush1.msra.mxu0 0.0
  %483 = vmatprep.subr.mxu0 0.0
  %484 = vmatpush1.msra.mxu0 0.0
  %485 = vmatprep.subr.mxu0 0.0
  %486 = vmatpush1.msra.mxu0 0.0
  %487 = vmatprep.subr.mxu0 0.0
  %488 = vmatpush1.msra.mxu0 0.0
  %489 = vmatprep.subr.mxu0 0.0
  %490 = vmatpush1.msra.mxu0 0.0
  %491 = vmatprep.subr.mxu0 0.0
  %492 = vmatpush1.msra.mxu0 0.0
  %493 = vmatprep.subr.mxu0 0.0
  %494 = vmatpush1.msra.mxu0 0.0
  %495 = vmatprep.subr.mxu0 0.0
  %496 = vmatpush1.msra.mxu0 0.0
  %497 = vmatprep.subr.mxu0 0.0
  %498 = vmatpush1.msra.mxu0 0.0
  %499 = vmatprep.subr.mxu0 0.0
  %500 = vmatpush1.msra.mxu0 0.0
  %501 = vmatprep.subr.mxu0 0.0
  %502 = vmatpush1.msra.mxu0 0.0
  %503 = vmatprep.mubr.f32.mxu0 0.0
  %504 = vmatmul.mubr.f32.gmra.mrb[0].mxu0 %v64
  %v505 = vpop.f32.mrb[0].mxu0
  %v506 = vadd.f32 %v437, %v505
  %v507 = vpop.f32.mrb[0].mxu0
  %508 = vmatprep.mubr.f32.mxu0 0.0
  %509 = vmatmul.mubr.f32.gmra.mrb[0].mxu0 %v65
  %v510 = vpop.f32.mrb[0].mxu0
  %v511 = vadd.f32 %v437, %v510
  %v512 = vpop.f32.mrb[0].mxu0
  %513 = vmatprep.mubr.f32.mxu0 0.0
  %514 = vmatmul.mubr.f32.gmra.mrb[0].mxu0 %v66
  %v515 = vpop.f32.mrb[0].mxu0
  %v516 = vadd.f32 %v437, %v515
  %v517 = vpop.f32.mrb[0].mxu0
  %518 = vmatprep.mubr.f32.mxu0 0.0
  %519 = vmatmul.mubr.f32.gmra.mrb[0].mxu0 %v67
  %v520 = vpop.f32.mrb[0].mxu0
  %v521 = vadd.f32 %v437, %v520
  %v522 = vpop.f32.mrb[0].mxu0
  %523 = vdwg.mxu0
  %v524 = vadd.f32 %v412, %v506
  %v525 = vadd.f32 %v413, %v511
  %v526 = vadd.f32 %v414, %v516
  %v527 = vadd.f32 %v415, %v521
  %v528 = vmax.f32 %v524, 0.0
  %v529 = vmax.f32 %v525, 0.0
  %v530 = vmax.f32 %v526, 0.0
  %v531 = vmax.f32 %v527, 0.0
  %v532 = vrot.slane %v528, 6
  %v533 = vrot.slane %v529, 6
  %v534 = vrot.slane %v530, 6
  %v535 = vrot.slane %v531, 6
  %vm536 = vcmp.lt.s32.totalorder %v73, 2
  %v537 = vsel %vm536, %v534, %v535
  %v538 = vsel %vm536, %v533, %v534
  %v539 = vsel %vm536, %v532, %v533
  %v540 = vsel %vm536, %v535, %v532
  %vm541 = vcmp.ge.s32.totalorder %v126, 2
  %vm542 = vcmp.ge.s32.totalorder %v127, 2
  %vm543 = vcmp.ge.s32.totalorder %v128, 2
  %vm544 = vcmp.ge.s32.totalorder %v129, 2
  %v545 = vsel %vm541, %v540, 0.0
  %v546 = vsel %vm542, %v539, 0.0
  %v547 = vsel %vm543, %v538, 0.0
  %v548 = vsel %vm544, %v537, 0.0
  %553 = vrot.lane.b32.xlu0 %v528, 32
  %v554 = vpop.permute.xlu0 %553
  %555 = vrot.lane.b32.xlu0 %v529, 32
  %v556 = vpop.permute.xlu0 %555
  %557 = vrot.lane.b32.xlu0 %v530, 32
  %v558 = vpop.permute.xlu0 %557
  %559 = vrot.lane.b32.xlu0 %v531, 32
  %v560 = vpop.permute.xlu0 %559
  %v565 = vsel %vm294, %v545, %v554
  %v566 = vsel %vm294, %v546, %v556
  %v567 = vsel %vm294, %v547, %v558
  %v568 = vsel %vm294, %v548, %v560
  %v569 = vld [vmem:[%s7] sm:$0xff]
  %v570 = vld [vmem:[%s7 + $0x8] sm:$0xff]
  %v571 = vld [vmem:[%s7 + $0x10] sm:$0xff]
  %v572 = vld [vmem:[%s7 + $0x18] sm:$0xff]
  %v573 = vld [vmem:[%s7 + $0x20] sm:$0xff]
  %v574 = vld [vmem:[%s7 + $0x28] sm:$0xff]
  %v575 = vld [vmem:[%s7 + $0x30] sm:$0xff]
  %v576 = vld [vmem:[%s7 + $0x38] sm:$0xff]
  %v577 = vld [vmem:[%s8] sm:$0x1]
  %v579 = vlaneseq
  %v580 = vshrl.u32 %v579, 7
  %v581 = vsub.s32 0, %v580
  %v582 = vrot.slane %v577, %v581
  %v585 = vsel %vm314, %v565, 0
  %v588 = vsel %vm314, %v566, 0
  %v591 = vsel %vm314, %v567, 0
  %v594 = vsel %vm314, %v568, 0
  %596 = vmatprep.subr.mxu0 0.0
  %597 = vmatpush1.msra.mxu0 %v569
  %598 = vmatprep.subr.mxu0 0.0
  %599 = vmatpush1.msra.mxu0 %v570
  %600 = vmatprep.subr.mxu0 0.0
  %601 = vmatpush1.msra.mxu0 %v571
  %602 = vmatprep.subr.mxu0 0.0
  %603 = vmatpush1.msra.mxu0 %v572
  %604 = vmatprep.subr.mxu0 0.0
  %605 = vmatpush1.msra.mxu0 %v573
  %606 = vmatprep.subr.mxu0 0.0
  %607 = vmatpush1.msra.mxu0 %v574
  %608 = vmatprep.subr.mxu0 0.0
  %609 = vmatpush1.msra.mxu0 %v575
  %610 = vmatprep.subr.mxu0 0.0
  %611 = vmatpush1.msra.mxu0 %v576
  %612 = vmatprep.subr.mxu0 0.0
  %613 = vmatpush1.msra.mxu0 0.0
  %614 = vmatprep.subr.mxu0 0.0
  %615 = vmatpush1.msra.mxu0 0.0
  %616 = vmatprep.subr.mxu0 0.0
  %617 = vmatpush1.msra.mxu0 0.0
  %618 = vmatprep.subr.mxu0 0.0
  %619 = vmatpush1.msra.mxu0 0.0
  %620 = vmatprep.subr.mxu0 0.0
  %621 = vmatpush1.msra.mxu0 0.0
  %622 = vmatprep.subr.mxu0 0.0
  %623 = vmatpush1.msra.mxu0 0.0
  %624 = vmatprep.subr.mxu0 0.0
  %625 = vmatpush1.msra.mxu0 0.0
  %626 = vmatprep.subr.mxu0 0.0
  %627 = vmatpush1.msra.mxu0 0.0
  %628 = vmatprep.subr.mxu0 0.0
  %629 = vmatpush1.msra.mxu0 0.0
  %630 = vmatprep.subr.mxu0 0.0
  %631 = vmatpush1.msra.mxu0 0.0
  %632 = vmatprep.subr.mxu0 0.0
  %633 = vmatpush1.msra.mxu0 0.0
  %634 = vmatprep.subr.mxu0 0.0
  %635 = vmatpush1.msra.mxu0 0.0
  %636 = vmatprep.subr.mxu0 0.0
  %637 = vmatpush1.msra.mxu0 0.0
  %638 = vmatprep.subr.mxu0 0.0
  %639 = vmatpush1.msra.mxu0 0.0
  %640 = vmatprep.subr.mxu0 0.0
  %641 = vmatpush1.msra.mxu0 0.0
  %642 = vmatprep.subr.mxu0 0.0
  %643 = vmatpush1.msra.mxu0 0.0
  %644 = vmatprep.subr.mxu0 0.0
  %645 = vmatpush1.msra.mxu0 0.0
  %646 = vmatprep.subr.mxu0 0.0
  %647 = vmatpush1.msra.mxu0 0.0
  %648 = vmatprep.subr.mxu0 0.0
  %649 = vmatpush1.msra.mxu0 0.0
  %650 = vmatprep.subr.mxu0 0.0
  %651 = vmatpush1.msra.mxu0 0.0
  %652 = vmatprep.subr.mxu0 0.0
  %653 = vmatpush1.msra.mxu0 0.0
  %654 = vmatprep.subr.mxu0 0.0
  %655 = vmatpush1.msra.mxu0 0.0
  %656 = vmatprep.subr.mxu0 0.0
  %657 = vmatpush1.msra.mxu0 0.0
  %658 = vmatprep.subr.mxu0 0.0
  %659 = vmatpush1.msra.mxu0 0.0
  %660 = vmatprep.mubr.f32.mxu0 0.0
  %661 = vmatmul.mubr.f32.gmra.mrb[0].mxu0 %v585
  %v662 = vpop.f32.mrb[0].mxu0
  %v663 = vadd.f32 %v582, %v662
  %v664 = vpop.f32.mrb[0].mxu0
  %665 = vmatprep.mubr.f32.mxu0 0.0
  %666 = vmatmul.mubr.f32.gmra.mrb[0].mxu0 %v588
  %v667 = vpop.f32.mrb[0].mxu0
  %v668 = vadd.f32 %v582, %v667
  %v669 = vpop.f32.mrb[0].mxu0
  %670 = vmatprep.mubr.f32.mxu0 0.0
  %671 = vmatmul.mubr.f32.gmra.mrb[0].mxu0 %v591
  %v672 = vpop.f32.mrb[0].mxu0
  %v673 = vadd.f32 %v582, %v672
  %v674 = vpop.f32.mrb[0].mxu0
  %675 = vmatprep.mubr.f32.mxu0 0.0
  %676 = vmatmul.mubr.f32.gmra.mrb[0].mxu0 %v594
  %v677 = vpop.f32.mrb[0].mxu0
  %v678 = vadd.f32 %v582, %v677
  %v679 = vpop.f32.mrb[0].mxu0
  %680 = vdwg.mxu0
  %v681 = vmax.f32 %v663, 0.0
  %v682 = vmax.f32 %v668, 0.0
  %v683 = vmax.f32 %v673, 0.0
  %v684 = vmax.f32 %v678, 0.0
  %v685 = vrot.slane %v681, 6
  %v686 = vrot.slane %v682, 6
  %v687 = vrot.slane %v683, 6
  %v688 = vrot.slane %v684, 6
  %v689 = vsel %vm536, %v687, %v688
  %v690 = vsel %vm536, %v686, %v687
  %v691 = vsel %vm536, %v685, %v686
  %v692 = vsel %vm536, %v688, %v685
  %v693 = vsel %vm541, %v692, 0.0
  %v694 = vsel %vm542, %v691, 0.0
  %v695 = vsel %vm543, %v690, 0.0
  %v696 = vsel %vm544, %v689, 0.0
  %701 = vrot.lane.b32.xlu0 %v681, 32
  %v702 = vpop.permute.xlu0 %701
  %703 = vrot.lane.b32.xlu0 %v682, 32
  %v704 = vpop.permute.xlu0 %703
  %705 = vrot.lane.b32.xlu0 %v683, 32
  %v706 = vpop.permute.xlu0 %705
  %707 = vrot.lane.b32.xlu0 %v684, 32
  %v708 = vpop.permute.xlu0 %707
  %v713 = vsel %vm294, %v693, %v702
  %v714 = vsel %vm294, %v694, %v704
  %v715 = vsel %vm294, %v695, %v706
  %v716 = vsel %vm294, %v696, %v708
  %v717 = vld [vmem:[%s9] sm:$0xff]
  %v718 = vld [vmem:[%s9 + $0x8] sm:$0xff]
  %v719 = vld [vmem:[%s9 + $0x10] sm:$0xff]
  %v720 = vld [vmem:[%s9 + $0x18] sm:$0xff]
  %v721 = vld [vmem:[%s9 + $0x20] sm:$0xff]
  %v722 = vld [vmem:[%s9 + $0x28] sm:$0xff]
  %v723 = vld [vmem:[%s9 + $0x30] sm:$0xff]
  %v724 = vld [vmem:[%s9 + $0x38] sm:$0xff]
  %v725 = vld [vmem:[%s10] sm:$0x1]
  %v727 = vlaneseq
  %v728 = vshrl.u32 %v727, 7
  %v729 = vsub.s32 0, %v728
  %v730 = vrot.slane %v725, %v729
  %v733 = vsel %vm314, %v713, 0
  %v736 = vsel %vm314, %v714, 0
  %v739 = vsel %vm314, %v715, 0
  %v742 = vsel %vm314, %v716, 0
  %744 = vmatprep.subr.mxu0 0.0
  %745 = vmatpush1.msra.mxu0 %v717
  %746 = vmatprep.subr.mxu0 0.0
  %747 = vmatpush1.msra.mxu0 %v718
  %748 = vmatprep.subr.mxu0 0.0
  %749 = vmatpush1.msra.mxu0 %v719
  %750 = vmatprep.subr.mxu0 0.0
  %751 = vmatpush1.msra.mxu0 %v720
  %752 = vmatprep.subr.mxu0 0.0
  %753 = vmatpush1.msra.mxu0 %v721
  %754 = vmatprep.subr.mxu0 0.0
  %755 = vmatpush1.msra.mxu0 %v722
  %756 = vmatprep.subr.mxu0 0.0
  %757 = vmatpush1.msra.mxu0 %v723
  %758 = vmatprep.subr.mxu0 0.0
  %759 = vmatpush1.msra.mxu0 %v724
  %760 = vmatprep.subr.mxu0 0.0
  %761 = vmatpush1.msra.mxu0 0.0
  %762 = vmatprep.subr.mxu0 0.0
  %763 = vmatpush1.msra.mxu0 0.0
  %764 = vmatprep.subr.mxu0 0.0
  %765 = vmatpush1.msra.mxu0 0.0
  %766 = vmatprep.subr.mxu0 0.0
  %767 = vmatpush1.msra.mxu0 0.0
  %768 = vmatprep.subr.mxu0 0.0
  %769 = vmatpush1.msra.mxu0 0.0
  %770 = vmatprep.subr.mxu0 0.0
  %771 = vmatpush1.msra.mxu0 0.0
  %772 = vmatprep.subr.mxu0 0.0
  %773 = vmatpush1.msra.mxu0 0.0
  %774 = vmatprep.subr.mxu0 0.0
  %775 = vmatpush1.msra.mxu0 0.0
  %776 = vmatprep.subr.mxu0 0.0
  %777 = vmatpush1.msra.mxu0 0.0
  %778 = vmatprep.subr.mxu0 0.0
  %779 = vmatpush1.msra.mxu0 0.0
  %780 = vmatprep.subr.mxu0 0.0
  %781 = vmatpush1.msra.mxu0 0.0
  %782 = vmatprep.subr.mxu0 0.0
  %783 = vmatpush1.msra.mxu0 0.0
  %784 = vmatprep.subr.mxu0 0.0
  %785 = vmatpush1.msra.mxu0 0.0
  %786 = vmatprep.subr.mxu0 0.0
  %787 = vmatpush1.msra.mxu0 0.0
  %788 = vmatprep.subr.mxu0 0.0
  %789 = vmatpush1.msra.mxu0 0.0
  %790 = vmatprep.subr.mxu0 0.0
  %791 = vmatpush1.msra.mxu0 0.0
  %792 = vmatprep.subr.mxu0 0.0
  %793 = vmatpush1.msra.mxu0 0.0
  %794 = vmatprep.subr.mxu0 0.0
  %795 = vmatpush1.msra.mxu0 0.0
  %796 = vmatprep.subr.mxu0 0.0
  %797 = vmatpush1.msra.mxu0 0.0
  %798 = vmatprep.subr.mxu0 0.0
  %799 = vmatpush1.msra.mxu0 0.0
  %800 = vmatprep.subr.mxu0 0.0
  %801 = vmatpush1.msra.mxu0 0.0
  %802 = vmatprep.subr.mxu0 0.0
  %803 = vmatpush1.msra.mxu0 0.0
  %804 = vmatprep.subr.mxu0 0.0
  %805 = vmatpush1.msra.mxu0 0.0
  %806 = vmatprep.subr.mxu0 0.0
  %807 = vmatpush1.msra.mxu0 0.0
  %808 = vmatprep.mubr.f32.mxu0 0.0
  %809 = vmatmul.mubr.f32.gmra.mrb[0].mxu0 %v733
  %v810 = vpop.f32.mrb[0].mxu0
  %v811 = vadd.f32 %v730, %v810
  %v812 = vpop.f32.mrb[0].mxu0
  %813 = vmatprep.mubr.f32.mxu0 0.0
  %814 = vmatmul.mubr.f32.gmra.mrb[0].mxu0 %v736
  %v815 = vpop.f32.mrb[0].mxu0
  %v816 = vadd.f32 %v730, %v815
  %v817 = vpop.f32.mrb[0].mxu0
  %818 = vmatprep.mubr.f32.mxu0 0.0
  %819 = vmatmul.mubr.f32.gmra.mrb[0].mxu0 %v739
  %v820 = vpop.f32.mrb[0].mxu0
  %v821 = vadd.f32 %v730, %v820
  %v822 = vpop.f32.mrb[0].mxu0
  %823 = vmatprep.mubr.f32.mxu0 0.0
  %824 = vmatmul.mubr.f32.gmra.mrb[0].mxu0 %v742
  %v825 = vpop.f32.mrb[0].mxu0
  %v826 = vadd.f32 %v730, %v825
  %v827 = vpop.f32.mrb[0].mxu0
  %828 = vdwg.mxu0
  %v829 = vmax.f32 %v811, 0.0
  %v830 = vmax.f32 %v816, 0.0
  %v831 = vmax.f32 %v821, 0.0
  %v832 = vmax.f32 %v826, 0.0
  %v833 = vadd.f32 %v829, %v528
  %v834 = vadd.f32 %v830, %v529
  %v835 = vadd.f32 %v831, %v530
  %v836 = vadd.f32 %v832, %v531
  %v837 = vmax.f32 %v833, 0.0
  %v838 = vmax.f32 %v834, 0.0
  %v839 = vmax.f32 %v835, 0.0
  %v840 = vmax.f32 %v836, 0.0
  %v841 = vrot.slane %v837, 4
  %v842 = vrot.slane %v838, 4
  %v843 = vrot.slane %v839, 4
  %v844 = vrot.slane %v840, 4
  %vm845 = vcmp.lt.s32.totalorder %v73, 4
  %v846 = vsel %vm845, %v843, %v844
  %v847 = vsel %vm845, %v842, %v843
  %v848 = vsel %vm845, %v841, %v842
  %v849 = vsel %vm845, %v844, %v841
  %vm850 = vcmp.ge.s32.totalorder %v126, 4
  %vm851 = vcmp.ge.s32.totalorder %v127, 4
  %vm852 = vcmp.ge.s32.totalorder %v128, 4
  %vm853 = vcmp.ge.s32.totalorder %v129, 4
  %v854 = vsel %vm850, %v849, 0.0
  %v855 = vsel %vm851, %v848, 0.0
  %v856 = vsel %vm852, %v847, 0.0
  %v857 = vsel %vm853, %v846, 0.0
  %862 = vrot.lane.b32.xlu0 %v837, 32
  %v863 = vpop.permute.xlu0 %862
  %864 = vrot.lane.b32.xlu0 %v838, 32
  %v865 = vpop.permute.xlu0 %864
  %866 = vrot.lane.b32.xlu0 %v839, 32
  %v867 = vpop.permute.xlu0 %866
  %868 = vrot.lane.b32.xlu0 %v840, 32
  %v869 = vpop.permute.xlu0 %868
  %v874 = vsel %vm294, %v854, %v863
  %v875 = vsel %vm294, %v855, %v865
  %v876 = vsel %vm294, %v856, %v867
  %v877 = vsel %vm294, %v857, %v869
  %v878 = vld [vmem:[%s11] sm:$0xff]
  %v879 = vld [vmem:[%s11 + $0x8] sm:$0xff]
  %v880 = vld [vmem:[%s11 + $0x10] sm:$0xff]
  %v881 = vld [vmem:[%s11 + $0x18] sm:$0xff]
  %v882 = vld [vmem:[%s11 + $0x20] sm:$0xff]
  %v883 = vld [vmem:[%s11 + $0x28] sm:$0xff]
  %v884 = vld [vmem:[%s11 + $0x30] sm:$0xff]
  %v885 = vld [vmem:[%s11 + $0x38] sm:$0xff]
  %v886 = vld [vmem:[%s12] sm:$0x1]
  %v888 = vlaneseq
  %v889 = vshrl.u32 %v888, 7
  %v890 = vsub.s32 0, %v889
  %v891 = vrot.slane %v886, %v890
  %v894 = vsel %vm314, %v874, 0
  %v897 = vsel %vm314, %v875, 0
  %v900 = vsel %vm314, %v876, 0
  %v903 = vsel %vm314, %v877, 0
  %905 = vmatprep.subr.mxu0 0.0
  %906 = vmatpush1.msra.mxu0 %v878
  %907 = vmatprep.subr.mxu0 0.0
  %908 = vmatpush1.msra.mxu0 %v879
  %909 = vmatprep.subr.mxu0 0.0
  %910 = vmatpush1.msra.mxu0 %v880
  %911 = vmatprep.subr.mxu0 0.0
  %912 = vmatpush1.msra.mxu0 %v881
  %913 = vmatprep.subr.mxu0 0.0
  %914 = vmatpush1.msra.mxu0 %v882
  %915 = vmatprep.subr.mxu0 0.0
  %916 = vmatpush1.msra.mxu0 %v883
  %917 = vmatprep.subr.mxu0 0.0
  %918 = vmatpush1.msra.mxu0 %v884
  %919 = vmatprep.subr.mxu0 0.0
  %920 = vmatpush1.msra.mxu0 %v885
  %921 = vmatprep.subr.mxu0 0.0
  %922 = vmatpush1.msra.mxu0 0.0
  %923 = vmatprep.subr.mxu0 0.0
  %924 = vmatpush1.msra.mxu0 0.0
  %925 = vmatprep.subr.mxu0 0.0
  %926 = vmatpush1.msra.mxu0 0.0
  %927 = vmatprep.subr.mxu0 0.0
  %928 = vmatpush1.msra.mxu0 0.0
  %929 = vmatprep.subr.mxu0 0.0
  %930 = vmatpush1.msra.mxu0 0.0
  %931 = vmatprep.subr.mxu0 0.0
  %932 = vmatpush1.msra.mxu0 0.0
  %933 = vmatprep.subr.mxu0 0.0
  %934 = vmatpush1.msra.mxu0 0.0
  %935 = vmatprep.subr.mxu0 0.0
  %936 = vmatpush1.msra.mxu0 0.0
  %937 = vmatprep.subr.mxu0 0.0
  %938 = vmatpush1.msra.mxu0 0.0
  %939 = vmatprep.subr.mxu0 0.0
  %940 = vmatpush1.msra.mxu0 0.0
  %941 = vmatprep.subr.mxu0 0.0
  %942 = vmatpush1.msra.mxu0 0.0
  %943 = vmatprep.subr.mxu0 0.0
  %944 = vmatpush1.msra.mxu0 0.0
  %945 = vmatprep.subr.mxu0 0.0
  %946 = vmatpush1.msra.mxu0 0.0
  %947 = vmatprep.subr.mxu0 0.0
  %948 = vmatpush1.msra.mxu0 0.0
  %949 = vmatprep.subr.mxu0 0.0
  %950 = vmatpush1.msra.mxu0 0.0
  %951 = vmatprep.subr.mxu0 0.0
  %952 = vmatpush1.msra.mxu0 0.0
  %953 = vmatprep.subr.mxu0 0.0
  %954 = vmatpush1.msra.mxu0 0.0
  %955 = vmatprep.subr.mxu0 0.0
  %956 = vmatpush1.msra.mxu0 0.0
  %957 = vmatprep.subr.mxu0 0.0
  %958 = vmatpush1.msra.mxu0 0.0
  %959 = vmatprep.subr.mxu0 0.0
  %960 = vmatpush1.msra.mxu0 0.0
  %961 = vmatprep.subr.mxu0 0.0
  %962 = vmatpush1.msra.mxu0 0.0
  %963 = vmatprep.subr.mxu0 0.0
  %964 = vmatpush1.msra.mxu0 0.0
  %965 = vmatprep.subr.mxu0 0.0
  %966 = vmatpush1.msra.mxu0 0.0
  %967 = vmatprep.subr.mxu0 0.0
  %968 = vmatpush1.msra.mxu0 0.0
  %969 = vmatprep.mubr.f32.mxu0 0.0
  %970 = vmatmul.mubr.f32.gmra.mrb[0].mxu0 %v894
  %v971 = vpop.f32.mrb[0].mxu0
  %v972 = vadd.f32 %v891, %v971
  %v973 = vpop.f32.mrb[0].mxu0
  %974 = vmatprep.mubr.f32.mxu0 0.0
  %975 = vmatmul.mubr.f32.gmra.mrb[0].mxu0 %v897
  %v976 = vpop.f32.mrb[0].mxu0
  %v977 = vadd.f32 %v891, %v976
  %v978 = vpop.f32.mrb[0].mxu0
  %979 = vmatprep.mubr.f32.mxu0 0.0
  %980 = vmatmul.mubr.f32.gmra.mrb[0].mxu0 %v900
  %v981 = vpop.f32.mrb[0].mxu0
  %v982 = vadd.f32 %v891, %v981
  %v983 = vpop.f32.mrb[0].mxu0
  %984 = vmatprep.mubr.f32.mxu0 0.0
  %985 = vmatmul.mubr.f32.gmra.mrb[0].mxu0 %v903
  %v986 = vpop.f32.mrb[0].mxu0
  %v987 = vadd.f32 %v891, %v986
  %v988 = vpop.f32.mrb[0].mxu0
  %989 = vdwg.mxu0
  %v990 = vmax.f32 %v972, 0.0
  %v991 = vmax.f32 %v977, 0.0
  %v992 = vmax.f32 %v982, 0.0
  %v993 = vmax.f32 %v987, 0.0
  %v994 = vrot.slane %v990, 4
  %v995 = vrot.slane %v991, 4
  %v996 = vrot.slane %v992, 4
  %v997 = vrot.slane %v993, 4
  %v998 = vsel %vm845, %v996, %v997
  %v999 = vsel %vm845, %v995, %v996
  %v1000 = vsel %vm845, %v994, %v995
  %v1001 = vsel %vm845, %v997, %v994
  %v1002 = vsel %vm850, %v1001, 0.0
  %v1003 = vsel %vm851, %v1000, 0.0
  %v1004 = vsel %vm852, %v999, 0.0
  %v1005 = vsel %vm853, %v998, 0.0
  %1010 = vrot.lane.b32.xlu0 %v990, 16
  %v1011 = vpop.permute.xlu0 %1010
  %1012 = vrot.lane.b32.xlu0 %v991, 16
  %v1013 = vpop.permute.xlu0 %1012
  %1014 = vrot.lane.b32.xlu0 %v992, 16
  %v1015 = vpop.permute.xlu0 %1014
  %1016 = vrot.lane.b32.xlu0 %v993, 16
  %v1017 = vpop.permute.xlu0 %1016
  %vm1022 = vcmask 130048
  %v1023 = vsel %vm1022, %v1002, %v1011
  %v1024 = vsel %vm1022, %v1003, %v1013
  %v1025 = vsel %vm1022, %v1004, %v1015
  %v1026 = vsel %vm1022, %v1005, %v1017
  %v1027 = vld [vmem:[%s13] sm:$0xff]
  %v1028 = vld [vmem:[%s13 + $0x8] sm:$0xff]
  %v1029 = vld [vmem:[%s13 + $0x10] sm:$0xff]
  %v1030 = vld [vmem:[%s13 + $0x18] sm:$0xff]
  %v1031 = vld [vmem:[%s14] sm:$0x1]
  %v1033 = vlaneseq
  %v1034 = vshrl.u32 %v1033, 7
  %v1035 = vsub.s32 0, %v1034
  %v1036 = vrot.slane %v1031, %v1035
  %v1039 = vsel %vm294, %v1023, 0
  %v1042 = vsel %vm294, %v1024, 0
  %v1045 = vsel %vm294, %v1025, 0
  %v1048 = vsel %vm294, %v1026, 0
  %1050 = vmatprep.subr.mxu0 0.0
  %1051 = vmatpush1.msra.mxu0 %v1027
  %1052 = vmatprep.subr.mxu0 0.0
  %1053 = vmatpush1.msra.mxu0 %v1028
  %1054 = vmatprep.subr.mxu0 0.0
  %1055 = vmatpush1.msra.mxu0 %v1029
  %1056 = vmatprep.subr.mxu0 0.0
  %1057 = vmatpush1.msra.mxu0 %v1030
  %1058 = vmatprep.subr.mxu0 0.0
  %1059 = vmatpush1.msra.mxu0 0.0
  %1060 = vmatprep.subr.mxu0 0.0
  %1061 = vmatpush1.msra.mxu0 0.0
  %1062 = vmatprep.subr.mxu0 0.0
  %1063 = vmatpush1.msra.mxu0 0.0
  %1064 = vmatprep.subr.mxu0 0.0
  %1065 = vmatpush1.msra.mxu0 0.0
  %1066 = vmatprep.subr.mxu0 0.0
  %1067 = vmatpush1.msra.mxu0 0.0
  %1068 = vmatprep.subr.mxu0 0.0
  %1069 = vmatpush1.msra.mxu0 0.0
  %1070 = vmatprep.subr.mxu0 0.0
  %1071 = vmatpush1.msra.mxu0 0.0
  %1072 = vmatprep.subr.mxu0 0.0
  %1073 = vmatpush1.msra.mxu0 0.0
  %1074 = vmatprep.subr.mxu0 0.0
  %1075 = vmatpush1.msra.mxu0 0.0
  %1076 = vmatprep.subr.mxu0 0.0
  %1077 = vmatpush1.msra.mxu0 0.0
  %1078 = vmatprep.subr.mxu0 0.0
  %1079 = vmatpush1.msra.mxu0 0.0
  %1080 = vmatprep.subr.mxu0 0.0
  %1081 = vmatpush1.msra.mxu0 0.0
  %1082 = vmatprep.subr.mxu0 0.0
  %1083 = vmatpush1.msra.mxu0 0.0
  %1084 = vmatprep.subr.mxu0 0.0
  %1085 = vmatpush1.msra.mxu0 0.0
  %1086 = vmatprep.subr.mxu0 0.0
  %1087 = vmatpush1.msra.mxu0 0.0
  %1088 = vmatprep.subr.mxu0 0.0
  %1089 = vmatpush1.msra.mxu0 0.0
  %1090 = vmatprep.subr.mxu0 0.0
  %1091 = vmatpush1.msra.mxu0 0.0
  %1092 = vmatprep.subr.mxu0 0.0
  %1093 = vmatpush1.msra.mxu0 0.0
  %1094 = vmatprep.subr.mxu0 0.0
  %1095 = vmatpush1.msra.mxu0 0.0
  %1096 = vmatprep.subr.mxu0 0.0
  %1097 = vmatpush1.msra.mxu0 0.0
  %1098 = vmatprep.subr.mxu0 0.0
  %1099 = vmatpush1.msra.mxu0 0.0
  %1100 = vmatprep.subr.mxu0 0.0
  %1101 = vmatpush1.msra.mxu0 0.0
  %1102 = vmatprep.subr.mxu0 0.0
  %1103 = vmatpush1.msra.mxu0 0.0
  %1104 = vmatprep.subr.mxu0 0.0
  %1105 = vmatpush1.msra.mxu0 0.0
  %1106 = vmatprep.subr.mxu0 0.0
  %1107 = vmatpush1.msra.mxu0 0.0
  %1108 = vmatprep.subr.mxu0 0.0
  %1109 = vmatpush1.msra.mxu0 0.0
  %1110 = vmatprep.subr.mxu0 0.0
  %1111 = vmatpush1.msra.mxu0 0.0
  %1112 = vmatprep.subr.mxu0 0.0
  %1113 = vmatpush1.msra.mxu0 0.0
  %1114 = vmatprep.mubr.f32.mxu0 0.0
  %1115 = vmatmul.mubr.f32.gmra.mrb[0].mxu0 %v1039
  %v1116 = vpop.f32.mrb[0].mxu0
  %v1117 = vadd.f32 %v1036, %v1116
  %v1118 = vpop.f32.mrb[0].mxu0
  %1119 = vmatprep.mubr.f32.mxu0 0.0
  %1120 = vmatmul.mubr.f32.gmra.mrb[0].mxu0 %v1042
  %v1121 = vpop.f32.mrb[0].mxu0
  %v1122 = vadd.f32 %v1036, %v1121
  %v1123 = vpop.f32.mrb[0].mxu0
  %1124 = vmatprep.mubr.f32.mxu0 0.0
  %1125 = vmatmul.mubr.f32.gmra.mrb[0].mxu0 %v1045
  %v1126 = vpop.f32.mrb[0].mxu0
  %v1127 = vadd.f32 %v1036, %v1126
  %v1128 = vpop.f32.mrb[0].mxu0
  %1129 = vmatprep.mubr.f32.mxu0 0.0
  %1130 = vmatmul.mubr.f32.gmra.mrb[0].mxu0 %v1048
  %v1131 = vpop.f32.mrb[0].mxu0
  %v1132 = vadd.f32 %v1036, %v1131
  %v1133 = vpop.f32.mrb[0].mxu0
  %1134 = vdwg.mxu0
  %v1135 = vmax.f32 %v1117, 0.0
  %v1136 = vmax.f32 %v1122, 0.0
  %v1137 = vmax.f32 %v1127, 0.0
  %v1138 = vmax.f32 %v1132, 0.0
  %v1139 = vld [vmem:[%s15] sm:$0xff]
  %v1140 = vld [vmem:[%s15 + $0x8] sm:$0xff]
  %v1141 = vld [vmem:[%s15 + $0x10] sm:$0xff]
  %v1142 = vld [vmem:[%s15 + $0x18] sm:$0xff]
  %v1143 = vld [vmem:[%s16] sm:$0x1]
  %v1145 = vlaneseq
  %v1146 = vshrl.u32 %v1145, 7
  %v1147 = vsub.s32 0, %v1146
  %v1148 = vrot.slane %v1143, %v1147
  %v1150 = vsel %vm294, %v837, 0
  %v1152 = vsel %vm294, %v838, 0
  %v1154 = vsel %vm294, %v839, 0
  %v1156 = vsel %vm294, %v840, 0
  %1158 = vmatprep.subr.mxu0 0.0
  %1159 = vmatpush1.msra.mxu0 %v1139
  %1160 = vmatprep.subr.mxu0 0.0
  %1161 = vmatpush1.msra.mxu0 %v1140
  %1162 = vmatprep.subr.mxu0 0.0
  %1163 = vmatpush1.msra.mxu0 %v1141
  %1164 = vmatprep.subr.mxu0 0.0
  %1165 = vmatpush1.msra.mxu0 %v1142
  %1166 = vmatprep.subr.mxu0 0.0
  %1167 = vmatpush1.msra.mxu0 0.0
  %1168 = vmatprep.subr.mxu0 0.0
  %1169 = vmatpush1.msra.mxu0 0.0
  %1170 = vmatprep.subr.mxu0 0.0
  %1171 = vmatpush1.msra.mxu0 0.0
  %1172 = vmatprep.subr.mxu0 0.0
  %1173 = vmatpush1.msra.mxu0 0.0
  %1174 = vmatprep.subr.mxu0 0.0
  %1175 = vmatpush1.msra.mxu0 0.0
  %1176 = vmatprep.subr.mxu0 0.0
  %1177 = vmatpush1.msra.mxu0 0.0
  %1178 = vmatprep.subr.mxu0 0.0
  %1179 = vmatpush1.msra.mxu0 0.0
  %1180 = vmatprep.subr.mxu0 0.0
  %1181 = vmatpush1.msra.mxu0 0.0
  %1182 = vmatprep.subr.mxu0 0.0
  %1183 = vmatpush1.msra.mxu0 0.0
  %1184 = vmatprep.subr.mxu0 0.0
  %1185 = vmatpush1.msra.mxu0 0.0
  %1186 = vmatprep.subr.mxu0 0.0
  %1187 = vmatpush1.msra.mxu0 0.0
  %1188 = vmatprep.subr.mxu0 0.0
  %1189 = vmatpush1.msra.mxu0 0.0
  %1190 = vmatprep.subr.mxu0 0.0
  %1191 = vmatpush1.msra.mxu0 0.0
  %1192 = vmatprep.subr.mxu0 0.0
  %1193 = vmatpush1.msra.mxu0 0.0
  %1194 = vmatprep.subr.mxu0 0.0
  %1195 = vmatpush1.msra.mxu0 0.0
  %1196 = vmatprep.subr.mxu0 0.0
  %1197 = vmatpush1.msra.mxu0 0.0
  %1198 = vmatprep.subr.mxu0 0.0
  %1199 = vmatpush1.msra.mxu0 0.0
  %1200 = vmatprep.subr.mxu0 0.0
  %1201 = vmatpush1.msra.mxu0 0.0
  %1202 = vmatprep.subr.mxu0 0.0
  %1203 = vmatpush1.msra.mxu0 0.0
  %1204 = vmatprep.subr.mxu0 0.0
  %1205 = vmatpush1.msra.mxu0 0.0
  %1206 = vmatprep.subr.mxu0 0.0
  %1207 = vmatpush1.msra.mxu0 0.0
  %1208 = vmatprep.subr.mxu0 0.0
  %1209 = vmatpush1.msra.mxu0 0.0
  %1210 = vmatprep.subr.mxu0 0.0
  %1211 = vmatpush1.msra.mxu0 0.0
  %1212 = vmatprep.subr.mxu0 0.0
  %1213 = vmatpush1.msra.mxu0 0.0
  %1214 = vmatprep.subr.mxu0 0.0
  %1215 = vmatpush1.msra.mxu0 0.0
  %1216 = vmatprep.subr.mxu0 0.0
  %1217 = vmatpush1.msra.mxu0 0.0
  %1218 = vmatprep.subr.mxu0 0.0
  %1219 = vmatpush1.msra.mxu0 0.0
  %1220 = vmatprep.subr.mxu0 0.0
  %1221 = vmatpush1.msra.mxu0 0.0
  %1222 = vmatprep.mubr.f32.mxu0 0.0
  %1223 = vmatmul.mubr.f32.gmra.mrb[0].mxu0 %v1150
  %v1224 = vpop.f32.mrb[0].mxu0
  %v1225 = vadd.f32 %v1148, %v1224
  %v1226 = vpop.f32.mrb[0].mxu0
  %1227 = vmatprep.mubr.f32.mxu0 0.0
  %1228 = vmatmul.mubr.f32.gmra.mrb[0].mxu0 %v1152
  %v1229 = vpop.f32.mrb[0].mxu0
  %v1230 = vadd.f32 %v1148, %v1229
  %v1231 = vpop.f32.mrb[0].mxu0
  %1232 = vmatprep.mubr.f32.mxu0 0.0
  %1233 = vmatmul.mubr.f32.gmra.mrb[0].mxu0 %v1154
  %v1234 = vpop.f32.mrb[0].mxu0
  %v1235 = vadd.f32 %v1148, %v1234
  %v1236 = vpop.f32.mrb[0].mxu0
  %1237 = vmatprep.mubr.f32.mxu0 0.0
  %1238 = vmatmul.mubr.f32.gmra.mrb[0].mxu0 %v1156
  %v1239 = vpop.f32.mrb[0].mxu0
  %v1240 = vadd.f32 %v1148, %v1239
  %v1241 = vpop.f32.mrb[0].mxu0
  %1242 = vdwg.mxu0
  %v1243 = vadd.f32 %v1135, %v1225
  %v1244 = vadd.f32 %v1136, %v1230
  %v1245 = vadd.f32 %v1137, %v1235
  %v1246 = vadd.f32 %v1138, %v1240
  %v1247 = vmax.f32 %v1243, 0.0
  %v1248 = vmax.f32 %v1244, 0.0
  %v1249 = vmax.f32 %v1245, 0.0
  %v1250 = vmax.f32 %v1246, 0.0
  %v1251 = vlaneseq
  %v1252 = vand.u32 %v1251, 127
  %v1253 = vmul.u32 %v73, 16
  %v1254 = vadd.s32 %v1253, 15
  %vm1255 = vcmp.eq.s32.totalorder %v1252, %v1254
  %v1256 = vsel %vm1255, 1, 0
  %v1257 = vcvt.s32.f32 %v1256
  %v1259 = vsel %vm294, %v1257, 0
  %1261 = vmatprep.subr.mxu0 0.0
  %1262 = vmatpush1.msra.mxu0 %v1247
  %1263 = vmatprep.subr.mxu0 0.0
  %1264 = vmatpush1.msra.mxu0 %v1248
  %1265 = vmatprep.subr.mxu0 0.0
  %1266 = vmatpush1.msra.mxu0 %v1249
  %1267 = vmatprep.subr.mxu0 0.0
  %1268 = vmatpush1.msra.mxu0 %v1250
  %1269 = vmatprep.subr.mxu0 0.0
  %1270 = vmatpush1.msra.mxu0 0.0
  %1271 = vmatprep.subr.mxu0 0.0
  %1272 = vmatpush1.msra.mxu0 0.0
  %1273 = vmatprep.subr.mxu0 0.0
  %1274 = vmatpush1.msra.mxu0 0.0
  %1275 = vmatprep.subr.mxu0 0.0
  %1276 = vmatpush1.msra.mxu0 0.0
  %1277 = vmatprep.subr.mxu0 0.0
  %1278 = vmatpush1.msra.mxu0 0.0
  %1279 = vmatprep.subr.mxu0 0.0
  %1280 = vmatpush1.msra.mxu0 0.0
  %1281 = vmatprep.subr.mxu0 0.0
  %1282 = vmatpush1.msra.mxu0 0.0
  %1283 = vmatprep.subr.mxu0 0.0
  %1284 = vmatpush1.msra.mxu0 0.0
  %1285 = vmatprep.subr.mxu0 0.0
  %1286 = vmatpush1.msra.mxu0 0.0
  %1287 = vmatprep.subr.mxu0 0.0
  %1288 = vmatpush1.msra.mxu0 0.0
  %1289 = vmatprep.subr.mxu0 0.0
  %1290 = vmatpush1.msra.mxu0 0.0
  %1291 = vmatprep.subr.mxu0 0.0
  %1292 = vmatpush1.msra.mxu0 0.0
  %1293 = vmatprep.subr.mxu0 0.0
  %1294 = vmatpush1.msra.mxu0 0.0
  %1295 = vmatprep.subr.mxu0 0.0
  %1296 = vmatpush1.msra.mxu0 0.0
  %1297 = vmatprep.subr.mxu0 0.0
  %1298 = vmatpush1.msra.mxu0 0.0
  %1299 = vmatprep.subr.mxu0 0.0
  %1300 = vmatpush1.msra.mxu0 0.0
  %1301 = vmatprep.subr.mxu0 0.0
  %1302 = vmatpush1.msra.mxu0 0.0
  %1303 = vmatprep.subr.mxu0 0.0
  %1304 = vmatpush1.msra.mxu0 0.0
  %1305 = vmatprep.subr.mxu0 0.0
  %1306 = vmatpush1.msra.mxu0 0.0
  %1307 = vmatprep.subr.mxu0 0.0
  %1308 = vmatpush1.msra.mxu0 0.0
  %1309 = vmatprep.subr.mxu0 0.0
  %1310 = vmatpush1.msra.mxu0 0.0
  %1311 = vmatprep.subr.mxu0 0.0
  %1312 = vmatpush1.msra.mxu0 0.0
  %1313 = vmatprep.subr.mxu0 0.0
  %1314 = vmatpush1.msra.mxu0 0.0
  %1315 = vmatprep.subr.mxu0 0.0
  %1316 = vmatpush1.msra.mxu0 0.0
  %1317 = vmatprep.subr.mxu0 0.0
  %1318 = vmatpush1.msra.mxu0 0.0
  %1319 = vmatprep.subr.mxu0 0.0
  %1320 = vmatpush1.msra.mxu0 0.0
  %1321 = vmatprep.subr.mxu0 0.0
  %1322 = vmatpush1.msra.mxu0 0.0
  %1323 = vmatprep.subr.mxu0 0.0
  %1324 = vmatpush1.msra.mxu0 0.0
  %1325 = vmatprep.mubr.f32.mxu0 0.0
  %1326 = vmatmul.mubr.f32.gmra.mrb[0].mxu0 %v1259
  %v1327 = vpop.f32.mrb[0].mxu0
  %v1328 = vadd.f32 0.0, %v1327
  %v1329 = vpop.f32.mrb[0].mxu0
  %1330 = vdwg.mxu0
  %v1331 = vld [vmem:[%s17] sm:$0xff]
  %v1332 = vld [vmem:[%s17 + $0x8] sm:$0xff]
  %v1333 = vld [vmem:[#allocation2] sm:$0x1]
  %v1335 = vlaneseq
  %v1336 = vshrl.u32 %v1335, 7
  %v1337 = vsub.s32 0, %v1336
  %v1338 = vrot.slane %v1333, %v1337
  %v1341 = vsel %vm1022, %v1328, 0
  %1343 = vmatprep.subr.mxu0 0.0
  %1344 = vmatpush1.msra.mxu0 %v1331
  %1345 = vmatprep.subr.mxu0 0.0
  %1346 = vmatpush1.msra.mxu0 %v1332
  %1347 = vmatprep.subr.mxu0 0.0
  %1348 = vmatpush1.msra.mxu0 0.0
  %1349 = vmatprep.subr.mxu0 0.0
  %1350 = vmatpush1.msra.mxu0 0.0
  %1351 = vmatprep.subr.mxu0 0.0
  %1352 = vmatpush1.msra.mxu0 0.0
  %1353 = vmatprep.subr.mxu0 0.0
  %1354 = vmatpush1.msra.mxu0 0.0
  %1355 = vmatprep.subr.mxu0 0.0
  %1356 = vmatpush1.msra.mxu0 0.0
  %1357 = vmatprep.subr.mxu0 0.0
  %1358 = vmatpush1.msra.mxu0 0.0
  %1359 = vmatprep.subr.mxu0 0.0
  %1360 = vmatpush1.msra.mxu0 0.0
  %1361 = vmatprep.subr.mxu0 0.0
  %1362 = vmatpush1.msra.mxu0 0.0
  %1363 = vmatprep.subr.mxu0 0.0
  %1364 = vmatpush1.msra.mxu0 0.0
  %1365 = vmatprep.subr.mxu0 0.0
  %1366 = vmatpush1.msra.mxu0 0.0
  %1367 = vmatprep.subr.mxu0 0.0
  %1368 = vmatpush1.msra.mxu0 0.0
  %1369 = vmatprep.subr.mxu0 0.0
  %1370 = vmatpush1.msra.mxu0 0.0
  %1371 = vmatprep.subr.mxu0 0.0
  %1372 = vmatpush1.msra.mxu0 0.0
  %1373 = vmatprep.subr.mxu0 0.0
  %1374 = vmatpush1.msra.mxu0 0.0
  %1375 = vmatprep.subr.mxu0 0.0
  %1376 = vmatpush1.msra.mxu0 0.0
  %1377 = vmatprep.subr.mxu0 0.0
  %1378 = vmatpush1.msra.mxu0 0.0
  %1379 = vmatprep.subr.mxu0 0.0
  %1380 = vmatpush1.msra.mxu0 0.0
  %1381 = vmatprep.subr.mxu0 0.0
  %1382 = vmatpush1.msra.mxu0 0.0
  %1383 = vmatprep.subr.mxu0 0.0
  %1384 = vmatpush1.msra.mxu0 0.0
  %1385 = vmatprep.subr.mxu0 0.0
  %1386 = vmatpush1.msra.mxu0 0.0
  %1387 = vmatprep.subr.mxu0 0.0
  %1388 = vmatpush1.msra.mxu0 0.0
  %1389 = vmatprep.subr.mxu0 0.0
  %1390 = vmatpush1.msra.mxu0 0.0
  %1391 = vmatprep.subr.mxu0 0.0
  %1392 = vmatpush1.msra.mxu0 0.0
  %1393 = vmatprep.subr.mxu0 0.0
  %1394 = vmatpush1.msra.mxu0 0.0
  %1395 = vmatprep.subr.mxu0 0.0
  %1396 = vmatpush1.msra.mxu0 0.0
  %1397 = vmatprep.subr.mxu0 0.0
  %1398 = vmatpush1.msra.mxu0 0.0
  %1399 = vmatprep.subr.mxu0 0.0
  %1400 = vmatpush1.msra.mxu0 0.0
  %1401 = vmatprep.subr.mxu0 0.0
  %1402 = vmatpush1.msra.mxu0 0.0
  %1403 = vmatprep.subr.mxu0 0.0
  %1404 = vmatpush1.msra.mxu0 0.0
  %1405 = vmatprep.subr.mxu0 0.0
  %1406 = vmatpush1.msra.mxu0 0.0
  %1407 = vmatprep.mubr.f32.mxu0 0.0
  %1408 = vmatmul.mubr.f32.gmra.mrb[0].mxu0 %v1341
  %v1409 = vpop.f32.mrb[0].mxu0
  %v1410 = vadd.f32 %v1338, %v1409
  %v1411 = vpop.f32.mrb[0].mxu0
  %1412 = vdwg.mxu0
  %vm1413 = vcmask 1024
  %1414 = vst.msk [vmem:[%s19] sm:$0x3] %vm1413, %v1410
  // Predicated region
  $region78: #{tpu_custom_call.1} parent=0 // pred_check
    _
  $region79: #{tpu_custom_call.1} parent=0 // pred_check_branch
    %1416 = sbr.rel (0) target = $region81
  $region80: #{tpu_custom_call.1} parent=0 // pred_region
    _
  $region81: #{tpu_custom_call.1} parent=0 // pred_fallthru
    _
  // Predicated region
  $region82: #{tpu_custom_call.1} parent=0 // pred_check
    _
  $region83: #{tpu_custom_call.1} parent=0 // pred_check_branch
    %1418 = sbr.rel (0) target = $region85
  $region84: #{tpu_custom_call.1} parent=0 // pred_region
    _
  $region85: #{tpu_custom_call.1} parent=0 // pred_fallthru
    _

</llo_original>
